<compile_context>
chip_gen: v7x
topology: tpu7x:2x2x1
jax: 0.10.0
libtpu: 0.0.40
codegen_flags: <defaults>
</compile_context>

<pallas_src>
import jax
import jax.numpy as jnp
from jax import lax
from jax.experimental import pallas as pl
from jax.experimental.pallas import tpu as pltpu


def _round_up(x, m):
    return ((x + m - 1) // m) * m


def _sigmoid(x):
    # Manual sigmoid (exp + reciprocal -> EUP); used identically in kernel and
    # reference so they stay bit-comparable.
    return 1.0 / (1.0 + jnp.exp(-x))


# ----------------------------------------------------------------------------
# Fused kernel: all LSTM layers + MLP head + output Linear in one invocation.
#   refs layout (all whole-array VMEM refs):
#     x_ref                       : [S, Bp, Ep]       seq-major padded embeds
#     per LSTM layer l:
#       wih_ref                   : [InP, 4*Hp]       (gate blocks at k*Hp)
#       whh_ref                   : [Hp, 4*Hp]
#       b_ref                     : [1, 4*Hp]         (b_ih + b_hh)
#     mlp_w_ref                   : [n_layers, Hp, Hp]
#     mlp_b_ref                   : [n_layers, 1, Hp]
#     out_w_ref                   : [Hp, Op]
#     out_b_ref                   : [1, Op]
#     out_ref (output)            : [L*Bp, Op]
# ----------------------------------------------------------------------------
def make_fused_kernel(num_lstm_layers, S, Bp, Hp):
    def kernel(*refs):
        x_ref = refs[0]
        lstm_refs = [(refs[1 + 3 * l], refs[2 + 3 * l], refs[3 + 3 * l])
                     for l in range(num_lstm_layers)]
        base = 1 + 3 * num_lstm_layers
        mlp_w_ref, mlp_b_ref, out_w_ref, out_b_ref = refs[base:base + 4]
        out_ref = refs[base + 4]

        x_seq = x_ref[...]                                   # [S, Bp, In0]
        finals = []
        for li, (wih_ref, whh_ref, b_ref) in enumerate(lstm_refs):
            wih = wih_ref[...]                               # [InP, 4Hp]
            whh = whh_ref[...]                               # [Hp, 4Hp]
            bias = b_ref[...]                                # [1, 4Hp]
            in_dim = wih.shape[0]

            # --- Hoisted input projection: one MXU-friendly matmul over all
            # timesteps instead of S tiny B-row matmuls inside the recurrence.
            x2d = x_seq.reshape(S * Bp, in_dim)
            xproj = (jnp.dot(x2d, wih, preferred_element_type=jnp.float32)
                     + bias)                                 # [S*Bp, 4Hp]

            h = jnp.zeros((Bp, Hp), jnp.float32)
            c = jnp.zeros((Bp, Hp), jnp.float32)
            h_steps = []
            # --- Serial recurrence, fully unrolled (S static & small). Only
            # h @ W_hh is on the critical path; gate slices are vreg-aligned
            # (multiples of Hp = 128 lanes).
            for t in range(S):
                gates = (xproj[t * Bp:(t + 1) * Bp, :]
                         + jnp.dot(h, whh,
                                   preferred_element_type=jnp.float32))
                i_g = _sigmoid(gates[:, 0 * Hp:1 * Hp])
                f_g = _sigmoid(gates[:, 1 * Hp:2 * Hp])
                g_g = jnp.tanh(gates[:, 2 * Hp:3 * Hp])
                o_g = _sigmoid(gates[:, 3 * Hp:4 * Hp])
                c = f_g * c + i_g * g_g
                h = o_g * jnp.tanh(c)
                if li + 1 < num_lstm_layers:
                    h_steps.append(h)
            finals.append(h)
            if li + 1 < num_lstm_layers:
                # Next layer's input stays in VMEM/vregs — never hits HBM.
                x_seq = jnp.stack(h_steps, axis=0)           # [S, Bp, Hp]

        # --- MLP head (OrthoLinear + ReLU) * n_layers, then output Linear,
        # applied to the stacked final hidden states [L*Bp, Hp].
        y = finals[0] if num_lstm_layers == 1 else jnp.concatenate(finals, 0)
        n_mlp = mlp_w_ref.shape[0]
        for i in range(n_mlp):                               # static unroll
            y = jnp.maximum(
                jnp.dot(y, mlp_w_ref[i], preferred_element_type=jnp.float32)
                + mlp_b_ref[i], 0.0)
        out = (jnp.dot(y, out_w_ref[...], preferred_element_type=jnp.float32)
               + out_b_ref[...])
        out_ref[...] = out.astype(out_ref.dtype)             # lane-dense store

    return kernel


# ----------------------------------------------------------------------------
# Parameter padding to lane/sublane-dense shapes (zeros are numerically inert:
# padded gate pre-activations are 0 -> tanh(0)=0 keeps padded c/h lanes at 0).
# ----------------------------------------------------------------------------
def prepare_kernel_params(params, emb_size, hidden_size, output_size):
    H = hidden_size
    Hp = _round_up(max(H, 1), 128)
    Ep = _round_up(max(emb_size, 1), 128)
    Op = _round_up(max(output_size, 1), 128)

    kp = {"dims": (Ep, Hp, Op)}

    emb = params["emb"]
    kp["emb"] = jnp.pad(emb, ((0, 0), (0, Ep - emb.shape[1])))

    lstm_p = []
    for li, (wih_t, whh_t, b) in enumerate(params["lstm"]):
        in_dim = wih_t.shape[0]
        in_pad = Ep if li == 0 else Hp
        wih_p = jnp.zeros((in_pad, 4 * Hp), jnp.float32)
        whh_p = jnp.zeros((Hp, 4 * Hp), jnp.float32)
        b_p = jnp.zeros((1, 4 * Hp), jnp.float32)
        for g in range(4):  # keep PyTorch gate order i, f, g, o
            wih_p = wih_p.at[:in_dim, g * Hp:g * Hp + H].set(
                wih_t[:, g * H:(g + 1) * H])
            whh_p = whh_p.at[:H, g * Hp:g * Hp + H].set(
                whh_t[:, g * H:(g + 1) * H])
            b_p = b_p.at[:, g * Hp:g * Hp + H].set(b[:, g * H:(g + 1) * H])
        lstm_p.append((wih_p, whh_p, b_p))
    kp["lstm"] = lstm_p

    n_layers = params["mlp_w"].shape[0]
    mlp_w_p = jnp.zeros((n_layers, Hp, Hp), jnp.float32)
    mlp_w_p = mlp_w_p.at[:, :H, :H].set(params["mlp_w"])
    mlp_b_p = jnp.zeros((n_layers, 1, Hp), jnp.float32)
    mlp_b_p = mlp_b_p.at[:, :, :H].set(params["mlp_b"])
    kp["mlp_w"], kp["mlp_b"] = mlp_w_p, mlp_b_p

    out_w_p = jnp.zeros((Hp, Op), jnp.float32)
    out_w_p = out_w_p.at[:H, :output_size].set(params["out_w"])
    out_b_p = jnp.zeros((1, Op), jnp.float32)
    out_b_p = out_b_p.at[:, :output_size].set(params["out_b"])
    kp["out_w"], kp["out_b"] = out_w_p, out_b_p
    return kp


# ----------------------------------------------------------------------------
# Full forward (Pallas path)
# ----------------------------------------------------------------------------
def lstm_model_forward(x_tokens, kparams, output_size):
    Ep, Hp, Op = kparams["dims"]
    B, S = x_tokens.shape
    Bp = _round_up(max(B, 1), 8)
    L = len(kparams["lstm"])

    # Embedding lookup (gather) + seq-major transpose + batch padding: glue.
    embeds = kparams["emb"][x_tokens]                    # [B, S, Ep]
    x_seq = jnp.transpose(embeds, (1, 0, 2))             # [S, B, Ep]
    if Bp != B:
        x_seq = jnp.pad(x_seq, ((0, 0), (0, Bp - B), (0, 0)))

    args = [x_seq]
    for (wih, whh, b) in kparams["lstm"]:
        args += [wih, whh, b]
    args += [kparams["mlp_w"], kparams["mlp_b"],
             kparams["out_w"], kparams["out_b"]]

    vmem = pl.BlockSpec(memory_space=pltpu.MemorySpace.VMEM)
    out_flat = pl.pallas_call(
        make_fused_kernel(L, S, Bp, Hp),
        out_shape=jax.ShapeDtypeStruct((L * Bp, Op), jnp.float32),
        in_specs=[vmem] * len(args),
        out_specs=vmem,
    )(*args)

    out = out_flat.reshape(L, Bp, Op)[:, :B, :output_size]
    # torch.squeeze(output, dim=0): drops dim 0 only when it has size 1.
    if L == 1:
        out = out[0]
    return out


# ----------------------------------------------------------------------------
# Pure-JAX reference (same math, unpadded params) for validation
# ----------------------------------------------------------------------------
def lstm_model_reference(x_tokens, params):
    embeds = params["emb"][x_tokens]                     # [B, S, E]
    x = embeds
    B = x.shape[0]
    h_list = []
    for (wih_t, whh_t, b) in params["lstm"]:
        H = whh_t.shape[0]

        def step(carry, x_t):
            h, c = carry
            gates = x_t @ wih_t + h @ whh_t + b[0]
            i_g, f_g, g_g, o_g = jnp.split(gates, 4, axis=-1)
            i_g, f_g, o_g = _sigmoid(i_g), _sigmoid(f_g), _sigmoid(o_g)
            g_g = jnp.tanh(g_g)
            c = f_g * c + i_g * g_g
            h = o_g * jnp.tanh(c)
            return (h, c), h

        init = (jnp.zeros((B, H), jnp.float32), jnp.zeros((B, H), jnp.float32))
        (hT, _), outs = lax.scan(step, init, jnp.swapaxes(x, 0, 1))
        x = jnp.swapaxes(outs, 0, 1)
        h_list.append(hT)

    hidden = jnp.stack(h_list, axis=0)                   # [L, B, H]
    L, _, H = hidden.shape
    y = hidden.reshape(L * B, H)
    for i in range(params["mlp_w"].shape[0]):
        y = jnp.maximum(y @ params["mlp_w"][i] + params["mlp_b"][i], 0.0)
    y = y @ params["out_w"] + params["out_b"]
    y = y.reshape(L, B, -1)
    if L == 1:
        y = y[0]
    return y


# ----------------------------------------------------------------------------
# Deterministic parameter initialization (shapes match the nn.Module __init__)
# ----------------------------------------------------------------------------
def init_params(key, vocab_size, emb_size, hidden_size, num_lstm_layers,
                n_layers, output_size):
    keys = jax.random.split(key, 3 + 4 * num_lstm_layers + n_layers + 2)
    k_it = iter(keys)

    params = {}
    # nn.Embedding default init: N(0, 1)
    params["emb"] = jax.random.normal(next(k_it), (vocab_size, emb_size),
                                      jnp.float32)

    # nn.LSTM default init: U(-1/sqrt(H), 1/sqrt(H)); gate order i, f, g, o
    k = 1.0 / jnp.sqrt(hidden_size)
    lstm_params = []
    for layer in range(num_lstm_layers):
        in_size = emb_size if layer == 0 else hidden_size
        w_ih = jax.random.uniform(next(k_it), (4 * hidden_size, in_size),
                                  jnp.float32, -k, k)
        w_hh = jax.random.uniform(next(k_it), (4 * hidden_size, hidden_size),
                                  jnp.float32, -k, k)
        b_ih = jax.random.uniform(next(k_it), (4 * hidden_size,),
                                  jnp.float32, -k, k)
        b_hh = jax.random.uniform(next(k_it), (4 * hidden_size,),
                                  jnp.float32, -k, k)
        lstm_params.append((w_ih.T, w_hh.T, (b_ih + b_hh)[None, :]))
    params["lstm"] = lstm_params

    # OrthoLinear: orthogonal weight, zero bias (stored pre-transposed)
    ortho = jax.nn.initializers.orthogonal()
    mlp_w = jnp.stack([ortho(next(k_it), (hidden_size, hidden_size),
                             jnp.float32).T for _ in range(n_layers)], axis=0)
    params["mlp_w"] = mlp_w
    params["mlp_b"] = jnp.zeros((n_layers, 1, hidden_size), jnp.float32)

    # Output nn.Linear default init: U(-1/sqrt(in), 1/sqrt(in))
    ko = 1.0 / jnp.sqrt(hidden_size)
    w_out = jax.random.uniform(next(k_it), (output_size, hidden_size),
                               jnp.float32, -ko, ko)
    b_out = jax.random.uniform(next(k_it), (output_size,),
                               jnp.float32, -ko, ko)
    params["out_w"] = w_out.T
    params["out_b"] = b_out[None, :]
    return params


if __name__ == "__main__":
    # Small config consistent with the module's forward.
    config = dict(vocab_size=32, embedding_size=32, hidden_size=32,
                  num_lstm_layers=1, n_layers=2, output_size=1, dropout=0.0)
    B, S = 2, 8

    key = jax.random.PRNGKey(0)
    k_params, k_x = jax.random.split(key)

    params = init_params(k_params, config["vocab_size"],
                         config["embedding_size"], config["hidden_size"],
                         config["num_lstm_layers"], config["n_layers"],
                         config["output_size"])
    kparams = prepare_kernel_params(params, config["embedding_size"],
                                    config["hidden_size"],
                                    config["output_size"])

    x = jax.random.randint(k_x, (B, S), 0, config["vocab_size"], jnp.int32)

    out = lstm_model_forward(x, kparams, config["output_size"])
    out = jax.block_until_ready(out)

    ref = lstm_model_reference(x, params)
    assert out.shape == (B, config["output_size"]), out.shape
    # Tolerance covers MXU f32 pass-decomposition differences between the
    # Pallas dot and the XLA reference dot; real bugs would be O(1e-1).
    assert jnp.allclose(out, ref, atol=5e-3, rtol=5e-3), (out, ref)

    print("KERNEL_OK")
</pallas_src>

<mosaic_0001>
module attributes {stable_mosaic.version = 11 : i64} {
  func.func @kernel(%arg0: memref<8x8x128xf32, #tpu.memory_space<vmem>>, %arg1: memref<128x512xf32, #tpu.memory_space<vmem>>, %arg2: memref<128x512xf32, #tpu.memory_space<vmem>>, %arg3: memref<1x512xf32, #tpu.memory_space<vmem>>, %arg4: memref<2x128x128xf32, #tpu.memory_space<vmem>>, %arg5: memref<2x1x128xf32, #tpu.memory_space<vmem>>, %arg6: memref<128x128xf32, #tpu.memory_space<vmem>>, %arg7: memref<1x128xf32, #tpu.memory_space<vmem>>, %arg8: memref<8x128xf32, #tpu.memory_space<vmem>>) attributes {dimension_semantics = [], scalar_prefetch = 0 : i64, scratch_operands = 0 : i64, tpu.core_type = #tpu.core_type<tc>} {
    %c0 = arith.constant 0 : index
    %c0_0 = arith.constant 0 : index
    %c0_1 = arith.constant 0 : index
    %0 = vector.load %arg0[%c0, %c0_0, %c0_1] : memref<8x8x128xf32, #tpu.memory_space<vmem>>, vector<8x8x128xf32>
    %c0_2 = arith.constant 0 : index
    %c0_3 = arith.constant 0 : index
    %1 = vector.load %arg1[%c0_2, %c0_3] : memref<128x512xf32, #tpu.memory_space<vmem>>, vector<128x512xf32>
    %c0_4 = arith.constant 0 : index
    %c0_5 = arith.constant 0 : index
    %2 = vector.load %arg2[%c0_4, %c0_5] : memref<128x512xf32, #tpu.memory_space<vmem>>, vector<128x512xf32>
    %c0_6 = arith.constant 0 : index
    %c0_7 = arith.constant 0 : index
    %3 = vector.load %arg3[%c0_6, %c0_7] : memref<1x512xf32, #tpu.memory_space<vmem>>, vector<1x512xf32>
    %4 = vector.shape_cast %0 : vector<8x8x128xf32> to vector<64x128xf32>
    %cst = arith.constant dense<0.000000e+00> : vector<64x512xf32>
    %5 = tpu.matmul %4, %1, %cst {dimension_numbers = #tpu.dot_dimension_numbers<[1], [0], [0], [1], [0, 0, 1, 1], [], []>} : vector<64x128xf32>, vector<128x512xf32>, vector<64x512xf32> -> vector<64x512xf32>
    %6 = vector.broadcast %3 : vector<1x512xf32> to vector<64x512xf32>
    %7 = arith.addf %5, %6 : vector<64x512xf32>
    %cst_8 = arith.constant 0.000000e+00 : f32
    %8 = vector.broadcast %cst_8 : f32 to vector<8x128xf32>
    %cst_9 = arith.constant 0.000000e+00 : f32
    %9 = vector.broadcast %cst_9 : f32 to vector<8x128xf32>
    %10 = vector.extract_strided_slice %7 {offsets = [0, 0], sizes = [8, 512], strides = [1, 1]} : vector<64x512xf32> to vector<8x512xf32>
    %cst_10 = arith.constant dense<0.000000e+00> : vector<8x512xf32>
    %11 = tpu.matmul %8, %2, %cst_10 {dimension_numbers = #tpu.dot_dimension_numbers<[1], [0], [0], [1], [0, 0, 1, 1], [], []>} : vector<8x128xf32>, vector<128x512xf32>, vector<8x512xf32> -> vector<8x512xf32>
    %12 = arith.addf %10, %11 : vector<8x512xf32>
    %13 = vector.extract_strided_slice %12 {offsets = [0, 0], sizes = [8, 128], strides = [1, 1]} : vector<8x512xf32> to vector<8x128xf32>
    %cst_11 = arith.constant 0.000000e+00 : f32
    %14 = vector.broadcast %cst_11 : f32 to vector<8x128xf32>
    %15 = arith.subf %14, %13 : vector<8x128xf32>
    %16 = math.exp %15 : vector<8x128xf32>
    %cst_12 = arith.constant 1.000000e+00 : f32
    %17 = vector.broadcast %cst_12 : f32 to vector<8x128xf32>
    %18 = arith.addf %17, %16 : vector<8x128xf32>
    %cst_13 = arith.constant 1.000000e+00 : f32
    %19 = vector.broadcast %cst_13 : f32 to vector<8x128xf32>
    %20 = arith.divf %19, %18 : vector<8x128xf32>
    %21 = vector.extract_strided_slice %12 {offsets = [0, 128], sizes = [8, 128], strides = [1, 1]} : vector<8x512xf32> to vector<8x128xf32>
    %cst_14 = arith.constant 0.000000e+00 : f32
    %22 = vector.broadcast %cst_14 : f32 to vector<8x128xf32>
    %23 = arith.subf %22, %21 : vector<8x128xf32>
    %24 = math.exp %23 : vector<8x128xf32>
    %cst_15 = arith.constant 1.000000e+00 : f32
    %25 = vector.broadcast %cst_15 : f32 to vector<8x128xf32>
    %26 = arith.addf %25, %24 : vector<8x128xf32>
    %cst_16 = arith.constant 1.000000e+00 : f32
    %27 = vector.broadcast %cst_16 : f32 to vector<8x128xf32>
    %28 = arith.divf %27, %26 : vector<8x128xf32>
    %29 = vector.extract_strided_slice %12 {offsets = [0, 256], sizes = [8, 128], strides = [1, 1]} : vector<8x512xf32> to vector<8x128xf32>
    %30 = math.tanh %29 : vector<8x128xf32>
    %31 = vector.extract_strided_slice %12 {offsets = [0, 384], sizes = [8, 128], strides = [1, 1]} : vector<8x512xf32> to vector<8x128xf32>
    %cst_17 = arith.constant 0.000000e+00 : f32
    %32 = vector.broadcast %cst_17 : f32 to vector<8x128xf32>
    %33 = arith.subf %32, %31 : vector<8x128xf32>
    %34 = math.exp %33 : vector<8x128xf32>
    %cst_18 = arith.constant 1.000000e+00 : f32
    %35 = vector.broadcast %cst_18 : f32 to vector<8x128xf32>
    %36 = arith.addf %35, %34 : vector<8x128xf32>
    %cst_19 = arith.constant 1.000000e+00 : f32
    %37 = vector.broadcast %cst_19 : f32 to vector<8x128xf32>
    %38 = arith.divf %37, %36 : vector<8x128xf32>
    %39 = arith.mulf %28, %9 : vector<8x128xf32>
    %40 = arith.mulf %20, %30 : vector<8x128xf32>
    %41 = arith.addf %39, %40 : vector<8x128xf32>
    %42 = math.tanh %41 : vector<8x128xf32>
    %43 = arith.mulf %38, %42 : vector<8x128xf32>
    %44 = vector.extract_strided_slice %7 {offsets = [8, 0], sizes = [8, 512], strides = [1, 1]} : vector<64x512xf32> to vector<8x512xf32>
    %cst_20 = arith.constant dense<0.000000e+00> : vector<8x512xf32>
    %45 = tpu.matmul %43, %2, %cst_20 {dimension_numbers = #tpu.dot_dimension_numbers<[1], [0], [0], [1], [0, 0, 1, 1], [], []>} : vector<8x128xf32>, vector<128x512xf32>, vector<8x512xf32> -> vector<8x512xf32>
    %46 = arith.addf %44, %45 : vector<8x512xf32>
    %47 = vector.extract_strided_slice %46 {offsets = [0, 0], sizes = [8, 128], strides = [1, 1]} : vector<8x512xf32> to vector<8x128xf32>
    %cst_21 = arith.constant 0.000000e+00 : f32
    %48 = vector.broadcast %cst_21 : f32 to vector<8x128xf32>
    %49 = arith.subf %48, %47 : vector<8x128xf32>
    %50 = math.exp %49 : vector<8x128xf32>
    %cst_22 = arith.constant 1.000000e+00 : f32
    %51 = vector.broadcast %cst_22 : f32 to vector<8x128xf32>
    %52 = arith.addf %51, %50 : vector<8x128xf32>
    %cst_23 = arith.constant 1.000000e+00 : f32
    %53 = vector.broadcast %cst_23 : f32 to vector<8x128xf32>
    %54 = arith.divf %53, %52 : vector<8x128xf32>
    %55 = vector.extract_strided_slice %46 {offsets = [0, 128], sizes = [8, 128], strides = [1, 1]} : vector<8x512xf32> to vector<8x128xf32>
    %cst_24 = arith.constant 0.000000e+00 : f32
    %56 = vector.broadcast %cst_24 : f32 to vector<8x128xf32>
    %57 = arith.subf %56, %55 : vector<8x128xf32>
    %58 = math.exp %57 : vector<8x128xf32>
    %cst_25 = arith.constant 1.000000e+00 : f32
    %59 = vector.broadcast %cst_25 : f32 to vector<8x128xf32>
    %60 = arith.addf %59, %58 : vector<8x128xf32>
    %cst_26 = arith.constant 1.000000e+00 : f32
    %61 = vector.broadcast %cst_26 : f32 to vector<8x128xf32>
    %62 = arith.divf %61, %60 : vector<8x128xf32>
    %63 = vector.extract_strided_slice %46 {offsets = [0, 256], sizes = [8, 128], strides = [1, 1]} : vector<8x512xf32> to vector<8x128xf32>
    %64 = math.tanh %63 : vector<8x128xf32>
    %65 = vector.extract_strided_slice %46 {offsets = [0, 384], sizes = [8, 128], strides = [1, 1]} : vector<8x512xf32> to vector<8x128xf32>
    %cst_27 = arith.constant 0.000000e+00 : f32
    %66 = vector.broadcast %cst_27 : f32 to vector<8x128xf32>
    %67 = arith.subf %66, %65 : vector<8x128xf32>
    %68 = math.exp %67 : vector<8x128xf32>
    %cst_28 = arith.constant 1.000000e+00 : f32
    %69 = vector.broadcast %cst_28 : f32 to vector<8x128xf32>
    %70 = arith.addf %69, %68 : vector<8x128xf32>
    %cst_29 = arith.constant 1.000000e+00 : f32
    %71 = vector.broadcast %cst_29 : f32 to vector<8x128xf32>
    %72 = arith.divf %71, %70 : vector<8x128xf32>
    %73 = arith.mulf %62, %41 : vector<8x128xf32>
    %74 = arith.mulf %54, %64 : vector<8x128xf32>
    %75 = arith.addf %73, %74 : vector<8x128xf32>
    %76 = math.tanh %75 : vector<8x128xf32>
    %77 = arith.mulf %72, %76 : vector<8x128xf32>
    %78 = vector.extract_strided_slice %7 {offsets = [16, 0], sizes = [8, 512], strides = [1, 1]} : vector<64x512xf32> to vector<8x512xf32>
    %cst_30 = arith.constant dense<0.000000e+00> : vector<8x512xf32>
    %79 = tpu.matmul %77, %2, %cst_30 {dimension_numbers = #tpu.dot_dimension_numbers<[1], [0], [0], [1], [0, 0, 1, 1], [], []>} : vector<8x128xf32>, vector<128x512xf32>, vector<8x512xf32> -> vector<8x512xf32>
    %80 = arith.addf %78, %79 : vector<8x512xf32>
    %81 = vector.extract_strided_slice %80 {offsets = [0, 0], sizes = [8, 128], strides = [1, 1]} : vector<8x512xf32> to vector<8x128xf32>
    %cst_31 = arith.constant 0.000000e+00 : f32
    %82 = vector.broadcast %cst_31 : f32 to vector<8x128xf32>
    %83 = arith.subf %82, %81 : vector<8x128xf32>
    %84 = math.exp %83 : vector<8x128xf32>
    %cst_32 = arith.constant 1.000000e+00 : f32
    %85 = vector.broadcast %cst_32 : f32 to vector<8x128xf32>
    %86 = arith.addf %85, %84 : vector<8x128xf32>
    %cst_33 = arith.constant 1.000000e+00 : f32
    %87 = vector.broadcast %cst_33 : f32 to vector<8x128xf32>
    %88 = arith.divf %87, %86 : vector<8x128xf32>
    %89 = vector.extract_strided_slice %80 {offsets = [0, 128], sizes = [8, 128], strides = [1, 1]} : vector<8x512xf32> to vector<8x128xf32>
    %cst_34 = arith.constant 0.000000e+00 : f32
    %90 = vector.broadcast %cst_34 : f32 to vector<8x128xf32>
    %91 = arith.subf %90, %89 : vector<8x128xf32>
    %92 = math.exp %91 : vector<8x128xf32>
    %cst_35 = arith.constant 1.000000e+00 : f32
    %93 = vector.broadcast %cst_35 : f32 to vector<8x128xf32>
    %94 = arith.addf %93, %92 : vector<8x128xf32>
    %cst_36 = arith.constant 1.000000e+00 : f32
    %95 = vector.broadcast %cst_36 : f32 to vector<8x128xf32>
    %96 = arith.divf %95, %94 : vector<8x128xf32>
    %97 = vector.extract_strided_slice %80 {offsets = [0, 256], sizes = [8, 128], strides = [1, 1]} : vector<8x512xf32> to vector<8x128xf32>
    %98 = math.tanh %97 : vector<8x128xf32>
    %99 = vector.extract_strided_slice %80 {offsets = [0, 384], sizes = [8, 128], strides = [1, 1]} : vector<8x512xf32> to vector<8x128xf32>
    %cst_37 = arith.constant 0.000000e+00 : f32
    %100 = vector.broadcast %cst_37 : f32 to vector<8x128xf32>
    %101 = arith.subf %100, %99 : vector<8x128xf32>
    %102 = math.exp %101 : vector<8x128xf32>
    %cst_38 = arith.constant 1.000000e+00 : f32
    %103 = vector.broadcast %cst_38 : f32 to vector<8x128xf32>
    %104 = arith.addf %103, %102 : vector<8x128xf32>
    %cst_39 = arith.constant 1.000000e+00 : f32
    %105 = vector.broadcast %cst_39 : f32 to vector<8x128xf32>
    %106 = arith.divf %105, %104 : vector<8x128xf32>
    %107 = arith.mulf %96, %75 : vector<8x128xf32>
    %108 = arith.mulf %88, %98 : vector<8x128xf32>
    %109 = arith.addf %107, %108 : vector<8x128xf32>
    %110 = math.tanh %109 : vector<8x128xf32>
    %111 = arith.mulf %106, %110 : vector<8x128xf32>
    %112 = vector.extract_strided_slice %7 {offsets = [24, 0], sizes = [8, 512], strides = [1, 1]} : vector<64x512xf32> to vector<8x512xf32>
    %cst_40 = arith.constant dense<0.000000e+00> : vector<8x512xf32>
    %113 = tpu.matmul %111, %2, %cst_40 {dimension_numbers = #tpu.dot_dimension_numbers<[1], [0], [0], [1], [0, 0, 1, 1], [], []>} : vector<8x128xf32>, vector<128x512xf32>, vector<8x512xf32> -> vector<8x512xf32>
    %114 = arith.addf %112, %113 : vector<8x512xf32>
    %115 = vector.extract_strided_slice %114 {offsets = [0, 0], sizes = [8, 128], strides = [1, 1]} : vector<8x512xf32> to vector<8x128xf32>
    %cst_41 = arith.constant 0.000000e+00 : f32
    %116 = vector.broadcast %cst_41 : f32 to vector<8x128xf32>
    %117 = arith.subf %116, %115 : vector<8x128xf32>
    %118 = math.exp %117 : vector<8x128xf32>
    %cst_42 = arith.constant 1.000000e+00 : f32
    %119 = vector.broadcast %cst_42 : f32 to vector<8x128xf32>
    %120 = arith.addf %119, %118 : vector<8x128xf32>
    %cst_43 = arith.constant 1.000000e+00 : f32
    %121 = vector.broadcast %cst_43 : f32 to vector<8x128xf32>
    %122 = arith.divf %121, %120 : vector<8x128xf32>
    %123 = vector.extract_strided_slice %114 {offsets = [0, 128], sizes = [8, 128], strides = [1, 1]} : vector<8x512xf32> to vector<8x128xf32>
    %cst_44 = arith.constant 0.000000e+00 : f32
    %124 = vector.broadcast %cst_44 : f32 to vector<8x128xf32>
    %125 = arith.subf %124, %123 : vector<8x128xf32>
    %126 = math.exp %125 : vector<8x128xf32>
    %cst_45 = arith.constant 1.000000e+00 : f32
    %127 = vector.broadcast %cst_45 : f32 to vector<8x128xf32>
    %128 = arith.addf %127, %126 : vector<8x128xf32>
    %cst_46 = arith.constant 1.000000e+00 : f32
    %129 = vector.broadcast %cst_46 : f32 to vector<8x128xf32>
    %130 = arith.divf %129, %128 : vector<8x128xf32>
    %131 = vector.extract_strided_slice %114 {offsets = [0, 256], sizes = [8, 128], strides = [1, 1]} : vector<8x512xf32> to vector<8x128xf32>
    %132 = math.tanh %131 : vector<8x128xf32>
    %133 = vector.extract_strided_slice %114 {offsets = [0, 384], sizes = [8, 128], strides = [1, 1]} : vector<8x512xf32> to vector<8x128xf32>
    %cst_47 = arith.constant 0.000000e+00 : f32
    %134 = vector.broadcast %cst_47 : f32 to vector<8x128xf32>
    %135 = arith.subf %134, %133 : vector<8x128xf32>
    %136 = math.exp %135 : vector<8x128xf32>
    %cst_48 = arith.constant 1.000000e+00 : f32
    %137 = vector.broadcast %cst_48 : f32 to vector<8x128xf32>
    %138 = arith.addf %137, %136 : vector<8x128xf32>
    %cst_49 = arith.constant 1.000000e+00 : f32
    %139 = vector.broadcast %cst_49 : f32 to vector<8x128xf32>
    %140 = arith.divf %139, %138 : vector<8x128xf32>
    %141 = arith.mulf %130, %109 : vector<8x128xf32>
    %142 = arith.mulf %122, %132 : vector<8x128xf32>
    %143 = arith.addf %141, %142 : vector<8x128xf32>
    %144 = math.tanh %143 : vector<8x128xf32>
    %145 = arith.mulf %140, %144 : vector<8x128xf32>
    %146 = vector.extract_strided_slice %7 {offsets = [32, 0], sizes = [8, 512], strides = [1, 1]} : vector<64x512xf32> to vector<8x512xf32>
    %cst_50 = arith.constant dense<0.000000e+00> : vector<8x512xf32>
    %147 = tpu.matmul %145, %2, %cst_50 {dimension_numbers = #tpu.dot_dimension_numbers<[1], [0], [0], [1], [0, 0, 1, 1], [], []>} : vector<8x128xf32>, vector<128x512xf32>, vector<8x512xf32> -> vector<8x512xf32>
    %148 = arith.addf %146, %147 : vector<8x512xf32>
    %149 = vector.extract_strided_slice %148 {offsets = [0, 0], sizes = [8, 128], strides = [1, 1]} : vector<8x512xf32> to vector<8x128xf32>
    %cst_51 = arith.constant 0.000000e+00 : f32
    %150 = vector.broadcast %cst_51 : f32 to vector<8x128xf32>
    %151 = arith.subf %150, %149 : vector<8x128xf32>
    %152 = math.exp %151 : vector<8x128xf32>
    %cst_52 = arith.constant 1.000000e+00 : f32
    %153 = vector.broadcast %cst_52 : f32 to vector<8x128xf32>
    %154 = arith.addf %153, %152 : vector<8x128xf32>
    %cst_53 = arith.constant 1.000000e+00 : f32
    %155 = vector.broadcast %cst_53 : f32 to vector<8x128xf32>
    %156 = arith.divf %155, %154 : vector<8x128xf32>
    %157 = vector.extract_strided_slice %148 {offsets = [0, 128], sizes = [8, 128], strides = [1, 1]} : vector<8x512xf32> to vector<8x128xf32>
    %cst_54 = arith.constant 0.000000e+00 : f32
    %158 = vector.broadcast %cst_54 : f32 to vector<8x128xf32>
    %159 = arith.subf %158, %157 : vector<8x128xf32>
    %160 = math.exp %159 : vector<8x128xf32>
    %cst_55 = arith.constant 1.000000e+00 : f32
    %161 = vector.broadcast %cst_55 : f32 to vector<8x128xf32>
    %162 = arith.addf %161, %160 : vector<8x128xf32>
    %cst_56 = arith.constant 1.000000e+00 : f32
    %163 = vector.broadcast %cst_56 : f32 to vector<8x128xf32>
    %164 = arith.divf %163, %162 : vector<8x128xf32>
    %165 = vector.extract_strided_slice %148 {offsets = [0, 256], sizes = [8, 128], strides = [1, 1]} : vector<8x512xf32> to vector<8x128xf32>
    %166 = math.tanh %165 : vector<8x128xf32>
    %167 = vector.extract_strided_slice %148 {offsets = [0, 384], sizes = [8, 128], strides = [1, 1]} : vector<8x512xf32> to vector<8x128xf32>
    %cst_57 = arith.constant 0.000000e+00 : f32
    %168 = vector.broadcast %cst_57 : f32 to vector<8x128xf32>
    %169 = arith.subf %168, %167 : vector<8x128xf32>
    %170 = math.exp %169 : vector<8x128xf32>
    %cst_58 = arith.constant 1.000000e+00 : f32
    %171 = vector.broadcast %cst_58 : f32 to vector<8x128xf32>
    %172 = arith.addf %171, %170 : vector<8x128xf32>
    %cst_59 = arith.constant 1.000000e+00 : f32
    %173 = vector.broadcast %cst_59 : f32 to vector<8x128xf32>
    %174 = arith.divf %173, %172 : vector<8x128xf32>
    %175 = arith.mulf %164, %143 : vector<8x128xf32>
    %176 = arith.mulf %156, %166 : vector<8x128xf32>
    %177 = arith.addf %175, %176 : vector<8x128xf32>
    %178 = math.tanh %177 : vector<8x128xf32>
    %179 = arith.mulf %174, %178 : vector<8x128xf32>
    %180 = vector.extract_strided_slice %7 {offsets = [40, 0], sizes = [8, 512], strides = [1, 1]} : vector<64x512xf32> to vector<8x512xf32>
    %cst_60 = arith.constant dense<0.000000e+00> : vector<8x512xf32>
    %181 = tpu.matmul %179, %2, %cst_60 {dimension_numbers = #tpu.dot_dimension_numbers<[1], [0], [0], [1], [0, 0, 1, 1], [], []>} : vector<8x128xf32>, vector<128x512xf32>, vector<8x512xf32> -> vector<8x512xf32>
    %182 = arith.addf %180, %181 : vector<8x512xf32>
    %183 = vector.extract_strided_slice %182 {offsets = [0, 0], sizes = [8, 128], strides = [1, 1]} : vector<8x512xf32> to vector<8x128xf32>
    %cst_61 = arith.constant 0.000000e+00 : f32
    %184 = vector.broadcast %cst_61 : f32 to vector<8x128xf32>
    %185 = arith.subf %184, %183 : vector<8x128xf32>
    %186 = math.exp %185 : vector<8x128xf32>
    %cst_62 = arith.constant 1.000000e+00 : f32
    %187 = vector.broadcast %cst_62 : f32 to vector<8x128xf32>
    %188 = arith.addf %187, %186 : vector<8x128xf32>
    %cst_63 = arith.constant 1.000000e+00 : f32
    %189 = vector.broadcast %cst_63 : f32 to vector<8x128xf32>
    %190 = arith.divf %189, %188 : vector<8x128xf32>
    %191 = vector.extract_strided_slice %182 {offsets = [0, 128], sizes = [8, 128], strides = [1, 1]} : vector<8x512xf32> to vector<8x128xf32>
    %cst_64 = arith.constant 0.000000e+00 : f32
    %192 = vector.broadcast %cst_64 : f32 to vector<8x128xf32>
    %193 = arith.subf %192, %191 : vector<8x128xf32>
    %194 = math.exp %193 : vector<8x128xf32>
    %cst_65 = arith.constant 1.000000e+00 : f32
    %195 = vector.broadcast %cst_65 : f32 to vector<8x128xf32>
    %196 = arith.addf %195, %194 : vector<8x128xf32>
    %cst_66 = arith.constant 1.000000e+00 : f32
    %197 = vector.broadcast %cst_66 : f32 to vector<8x128xf32>
    %198 = arith.divf %197, %196 : vector<8x128xf32>
    %199 = vector.extract_strided_slice %182 {offsets = [0, 256], sizes = [8, 128], strides = [1, 1]} : vector<8x512xf32> to vector<8x128xf32>
    %200 = math.tanh %199 : vector<8x128xf32>
    %201 = vector.extract_strided_slice %182 {offsets = [0, 384], sizes = [8, 128], strides = [1, 1]} : vector<8x512xf32> to vector<8x128xf32>
    %cst_67 = arith.constant 0.000000e+00 : f32
    %202 = vector.broadcast %cst_67 : f32 to vector<8x128xf32>
    %203 = arith.subf %202, %201 : vector<8x128xf32>
    %204 = math.exp %203 : vector<8x128xf32>
    %cst_68 = arith.constant 1.000000e+00 : f32
    %205 = vector.broadcast %cst_68 : f32 to vector<8x128xf32>
    %206 = arith.addf %205, %204 : vector<8x128xf32>
    %cst_69 = arith.constant 1.000000e+00 : f32
    %207 = vector.broadcast %cst_69 : f32 to vector<8x128xf32>
    %208 = arith.divf %207, %206 : vector<8x128xf32>
    %209 = arith.mulf %198, %177 : vector<8x128xf32>
    %210 = arith.mulf %190, %200 : vector<8x128xf32>
    %211 = arith.addf %209, %210 : vector<8x128xf32>
    %212 = math.tanh %211 : vector<8x128xf32>
    %213 = arith.mulf %208, %212 : vector<8x128xf32>
    %214 = vector.extract_strided_slice %7 {offsets = [48, 0], sizes = [8, 512], strides = [1, 1]} : vector<64x512xf32> to vector<8x512xf32>
    %cst_70 = arith.constant dense<0.000000e+00> : vector<8x512xf32>
    %215 = tpu.matmul %213, %2, %cst_70 {dimension_numbers = #tpu.dot_dimension_numbers<[1], [0], [0], [1], [0, 0, 1, 1], [], []>} : vector<8x128xf32>, vector<128x512xf32>, vector<8x512xf32> -> vector<8x512xf32>
    %216 = arith.addf %214, %215 : vector<8x512xf32>
    %217 = vector.extract_strided_slice %216 {offsets = [0, 0], sizes = [8, 128], strides = [1, 1]} : vector<8x512xf32> to vector<8x128xf32>
    %cst_71 = arith.constant 0.000000e+00 : f32
    %218 = vector.broadcast %cst_71 : f32 to vector<8x128xf32>
    %219 = arith.subf %218, %217 : vector<8x128xf32>
    %220 = math.exp %219 : vector<8x128xf32>
    %cst_72 = arith.constant 1.000000e+00 : f32
    %221 = vector.broadcast %cst_72 : f32 to vector<8x128xf32>
    %222 = arith.addf %221, %220 : vector<8x128xf32>
    %cst_73 = arith.constant 1.000000e+00 : f32
    %223 = vector.broadcast %cst_73 : f32 to vector<8x128xf32>
    %224 = arith.divf %223, %222 : vector<8x128xf32>
    %225 = vector.extract_strided_slice %216 {offsets = [0, 128], sizes = [8, 128], strides = [1, 1]} : vector<8x512xf32> to vector<8x128xf32>
    %cst_74 = arith.constant 0.000000e+00 : f32
    %226 = vector.broadcast %cst_74 : f32 to vector<8x128xf32>
    %227 = arith.subf %226, %225 : vector<8x128xf32>
    %228 = math.exp %227 : vector<8x128xf32>
    %cst_75 = arith.constant 1.000000e+00 : f32
    %229 = vector.broadcast %cst_75 : f32 to vector<8x128xf32>
    %230 = arith.addf %229, %228 : vector<8x128xf32>
    %cst_76 = arith.constant 1.000000e+00 : f32
    %231 = vector.broadcast %cst_76 : f32 to vector<8x128xf32>
    %232 = arith.divf %231, %230 : vector<8x128xf32>
    %233 = vector.extract_strided_slice %216 {offsets = [0, 256], sizes = [8, 128], strides = [1, 1]} : vector<8x512xf32> to vector<8x128xf32>
    %234 = math.tanh %233 : vector<8x128xf32>
    %235 = vector.extract_strided_slice %216 {offsets = [0, 384], sizes = [8, 128], strides = [1, 1]} : vector<8x512xf32> to vector<8x128xf32>
    %cst_77 = arith.constant 0.000000e+00 : f32
    %236 = vector.broadcast %cst_77 : f32 to vector<8x128xf32>
    %237 = arith.subf %236, %235 : vector<8x128xf32>
    %238 = math.exp %237 : vector<8x128xf32>
    %cst_78 = arith.constant 1.000000e+00 : f32
    %239 = vector.broadcast %cst_78 : f32 to vector<8x128xf32>
    %240 = arith.addf %239, %238 : vector<8x128xf32>
    %cst_79 = arith.constant 1.000000e+00 : f32
    %241 = vector.broadcast %cst_79 : f32 to vector<8x128xf32>
    %242 = arith.divf %241, %240 : vector<8x128xf32>
    %243 = arith.mulf %232, %211 : vector<8x128xf32>
    %244 = arith.mulf %224, %234 : vector<8x128xf32>
    %245 = arith.addf %243, %244 : vector<8x128xf32>
    %246 = math.tanh %245 : vector<8x128xf32>
    %247 = arith.mulf %242, %246 : vector<8x128xf32>
    %248 = vector.extract_strided_slice %7 {offsets = [56, 0], sizes = [8, 512], strides = [1, 1]} : vector<64x512xf32> to vector<8x512xf32>
    %cst_80 = arith.constant dense<0.000000e+00> : vector<8x512xf32>
    %249 = tpu.matmul %247, %2, %cst_80 {dimension_numbers = #tpu.dot_dimension_numbers<[1], [0], [0], [1], [0, 0, 1, 1], [], []>} : vector<8x128xf32>, vector<128x512xf32>, vector<8x512xf32> -> vector<8x512xf32>
    %250 = arith.addf %248, %249 : vector<8x512xf32>
    %251 = vector.extract_strided_slice %250 {offsets = [0, 0], sizes = [8, 128], strides = [1, 1]} : vector<8x512xf32> to vector<8x128xf32>
    %cst_81 = arith.constant 0.000000e+00 : f32
    %252 = vector.broadcast %cst_81 : f32 to vector<8x128xf32>
    %253 = arith.subf %252, %251 : vector<8x128xf32>
    %254 = math.exp %253 : vector<8x128xf32>
    %cst_82 = arith.constant 1.000000e+00 : f32
    %255 = vector.broadcast %cst_82 : f32 to vector<8x128xf32>
    %256 = arith.addf %255, %254 : vector<8x128xf32>
    %cst_83 = arith.constant 1.000000e+00 : f32
    %257 = vector.broadcast %cst_83 : f32 to vector<8x128xf32>
    %258 = arith.divf %257, %256 : vector<8x128xf32>
    %259 = vector.extract_strided_slice %250 {offsets = [0, 128], sizes = [8, 128], strides = [1, 1]} : vector<8x512xf32> to vector<8x128xf32>
    %cst_84 = arith.constant 0.000000e+00 : f32
    %260 = vector.broadcast %cst_84 : f32 to vector<8x128xf32>
    %261 = arith.subf %260, %259 : vector<8x128xf32>
    %262 = math.exp %261 : vector<8x128xf32>
    %cst_85 = arith.constant 1.000000e+00 : f32
    %263 = vector.broadcast %cst_85 : f32 to vector<8x128xf32>
    %264 = arith.addf %263, %262 : vector<8x128xf32>
    %cst_86 = arith.constant 1.000000e+00 : f32
    %265 = vector.broadcast %cst_86 : f32 to vector<8x128xf32>
    %266 = arith.divf %265, %264 : vector<8x128xf32>
    %267 = vector.extract_strided_slice %250 {offsets = [0, 256], sizes = [8, 128], strides = [1, 1]} : vector<8x512xf32> to vector<8x128xf32>
    %268 = math.tanh %267 : vector<8x128xf32>
    %269 = vector.extract_strided_slice %250 {offsets = [0, 384], sizes = [8, 128], strides = [1, 1]} : vector<8x512xf32> to vector<8x128xf32>
    %cst_87 = arith.constant 0.000000e+00 : f32
    %270 = vector.broadcast %cst_87 : f32 to vector<8x128xf32>
    %271 = arith.subf %270, %269 : vector<8x128xf32>
    %272 = math.exp %271 : vector<8x128xf32>
    %cst_88 = arith.constant 1.000000e+00 : f32
    %273 = vector.broadcast %cst_88 : f32 to vector<8x128xf32>
    %274 = arith.addf %273, %272 : vector<8x128xf32>
    %cst_89 = arith.constant 1.000000e+00 : f32
    %275 = vector.broadcast %cst_89 : f32 to vector<8x128xf32>
    %276 = arith.divf %275, %274 : vector<8x128xf32>
    %277 = arith.mulf %266, %245 : vector<8x128xf32>
    %278 = arith.mulf %258, %268 : vector<8x128xf32>
    %279 = arith.addf %277, %278 : vector<8x128xf32>
    %280 = math.tanh %279 : vector<8x128xf32>
    %281 = arith.mulf %276, %280 : vector<8x128xf32>
    %c0_90 = arith.constant 0 : index
    %c0_91 = arith.constant 0 : index
    %c0_92 = arith.constant 0 : index
    %282 = vector.load %arg4[%c0_90, %c0_91, %c0_92] : memref<2x128x128xf32, #tpu.memory_space<vmem>>, vector<1x128x128xf32>
    %283 = vector.shape_cast %282 : vector<1x128x128xf32> to vector<128x128xf32>
    %cst_93 = arith.constant dense<0.000000e+00> : vector<8x128xf32>
    %284 = tpu.matmul %281, %283, %cst_93 {dimension_numbers = #tpu.dot_dimension_numbers<[1], [0], [0], [1], [0, 0, 1, 1], [], []>} : vector<8x128xf32>, vector<128x128xf32>, vector<8x128xf32> -> vector<8x128xf32>
    %c0_94 = arith.constant 0 : index
    %c0_95 = arith.constant 0 : index
    %c0_96 = arith.constant 0 : index
    %285 = vector.load %arg5[%c0_94, %c0_95, %c0_96] : memref<2x1x128xf32, #tpu.memory_space<vmem>>, vector<1x1x128xf32>
    %286 = vector.shape_cast %285 : vector<1x1x128xf32> to vector<1x128xf32>
    %287 = vector.broadcast %286 : vector<1x128xf32> to vector<8x128xf32>
    %288 = arith.addf %284, %287 : vector<8x128xf32>
    %cst_97 = arith.constant 0.000000e+00 : f32
    %289 = vector.broadcast %cst_97 : f32 to vector<8x128xf32>
    %290 = arith.maximumf %288, %289 : vector<8x128xf32>
    %c1 = arith.constant 1 : index
    %c0_98 = arith.constant 0 : index
    %c0_99 = arith.constant 0 : index
    %291 = vector.load %arg4[%c1, %c0_98, %c0_99] : memref<2x128x128xf32, #tpu.memory_space<vmem>>, vector<1x128x128xf32>
    %292 = vector.shape_cast %291 : vector<1x128x128xf32> to vector<128x128xf32>
    %cst_100 = arith.constant dense<0.000000e+00> : vector<8x128xf32>
    %293 = tpu.matmul %290, %292, %cst_100 {dimension_numbers = #tpu.dot_dimension_numbers<[1], [0], [0], [1], [0, 0, 1, 1], [], []>} : vector<8x128xf32>, vector<128x128xf32>, vector<8x128xf32> -> vector<8x128xf32>
    %c1_101 = arith.constant 1 : index
    %c0_102 = arith.constant 0 : index
    %c0_103 = arith.constant 0 : index
    %294 = vector.load %arg5[%c1_101, %c0_102, %c0_103] : memref<2x1x128xf32, #tpu.memory_space<vmem>>, vector<1x1x128xf32>
    %295 = vector.shape_cast %294 : vector<1x1x128xf32> to vector<1x128xf32>
    %296 = vector.broadcast %295 : vector<1x128xf32> to vector<8x128xf32>
    %297 = arith.addf %293, %296 : vector<8x128xf32>
    %cst_104 = arith.constant 0.000000e+00 : f32
    %298 = vector.broadcast %cst_104 : f32 to vector<8x128xf32>
    %299 = arith.maximumf %297, %298 : vector<8x128xf32>
    %c0_105 = arith.constant 0 : index
    %c0_106 = arith.constant 0 : index
    %300 = vector.load %arg6[%c0_105, %c0_106] : memref<128x128xf32, #tpu.memory_space<vmem>>, vector<128x128xf32>
    %cst_107 = arith.constant dense<0.000000e+00> : vector<8x128xf32>
    %301 = tpu.matmul %299, %300, %cst_107 {dimension_numbers = #tpu.dot_dimension_numbers<[1], [0], [0], [1], [0, 0, 1, 1], [], []>} : vector<8x128xf32>, vector<128x128xf32>, vector<8x128xf32> -> vector<8x128xf32>
    %c0_108 = arith.constant 0 : index
    %c0_109 = arith.constant 0 : index
    %302 = vector.load %arg7[%c0_108, %c0_109] : memref<1x128xf32, #tpu.memory_space<vmem>>, vector<1x128xf32>
    %303 = vector.broadcast %302 : vector<1x128xf32> to vector<8x128xf32>
    %304 = arith.addf %301, %303 : vector<8x128xf32>
    %c0_110 = arith.constant 0 : index
    %c0_111 = arith.constant 0 : index
    %305 = vector.load %arg8[%c0_110, %c0_111] : memref<8x128xf32, #tpu.memory_space<vmem>>, vector<8x128xf32>
    tpu.vector_store %arg8[%c0_110, %c0_111], %304 {strides = array<i32>} : memref<8x128xf32, #tpu.memory_space<vmem>>, vector<8x128xf32>,
    return
  }
}

</mosaic_0001>

<llo_original>
// kernel: tpu_custom_call.1
$region0: #{tpu_custom_call.1}
  #allocation0 [shape = 'u32[]', space=smem, size = 0x4, offset = 0x4, fixed_abs, tag = 'smem constant byte address 0x4 - core index']
  #allocation1 [shape = 'u32[144,128]{1,0:T(1,128)}', space=vmem, size = 0x12000, scoped, tag = 'internal scratch']
  %s0 = inlined_call_operand.hbm [shape: f32[8,8,128], index: 0, kind: input, shape index: {}]
  %s1 = inlined_call_operand.hbm [shape: f32[128,512], index: 1, kind: input, shape index: {}]
  %s2 = inlined_call_operand.hbm [shape: f32[128,512], index: 2, kind: input, shape index: {}]
  %s3 = inlined_call_operand.vmem [shape: f32[1,512], index: 3, kind: input, shape index: {}]
  %s4 = inlined_call_operand.hbm [shape: f32[2,128,128], index: 4, kind: input, shape index: {}]
  %s5 = inlined_call_operand.vmem [shape: f32[2,1,128], index: 5, kind: input, shape index: {}]
  %s6 = inlined_call_operand.hbm [shape: f32[128,128], index: 6, kind: input, shape index: {}]
  %s7 = inlined_call_operand.vmem [shape: f32[1,128], index: 7, kind: input, shape index: {}]
  %s8 = inlined_call_operand.hbm [shape: f32[8,128], index: 8, kind: output, shape index: {}]
  %s9 = sld [smem:[#allocation0]]
  $region62: #{tpu_custom_call.1} parent=0
    _
  %s11 = ssub.s32 1, %s9
  %s12 = scalar_select 0, %s11, %s9
  $region1: #{tpu_custom_call.1} parent=0
    #allocation2 [shape = 'u8[32768]{0}', space=vmem, size = 0x8000, scoped, tag = 'input window, operand 0, single buffered']
    #allocation3 [shape = 's32[1]{0}', space=sflag, size = 0x4, scoped, tag = 'scoped memory for tpu_custom_call.1']
    #allocation4 [shape = 's32[1]{0}', space=sflag, size = 0x4, scoped, tag = 'scoped memory for tpu_custom_call.1']
    #allocation5 [shape = 'u8[262144]{0}', space=vmem, size = 0x40000, scoped, tag = 'input window, operand 1, single buffered']
    #allocation6 [shape = 's32[1]{0}', space=sflag, size = 0x4, scoped, tag = 'scoped memory for tpu_custom_call.1']
    #allocation7 [shape = 'u8[262144]{0}', space=vmem, size = 0x40000, scoped, tag = 'input window, operand 2, single buffered']
    #allocation8 [shape = 'u8[131072]{0}', space=vmem, size = 0x20000, scoped, tag = 'input window, operand 4, single buffered']
    #allocation9 [shape = 's32[1]{0}', space=sflag, size = 0x4, scoped, tag = 'scoped memory for tpu_custom_call.1']
    #allocation10 [shape = 'u8[65536]{0}', space=vmem, size = 0x10000, scoped, tag = 'input window, operand 6, single buffered']
    #allocation11 [shape = 'u8[4096]{0}', space=vmem, size = 0x1000, scoped, tag = 'output window, operand 0, single buffered']
    %13 = vsyncpa [#allocation3], 0
    %14 = vsyncpa [#allocation6], 0
    %15 = vsyncpa [#allocation9], 0
    %16 = vsyncpa [#allocation4], 0
    // Predicated region
    $region2: #{tpu_custom_call.1} parent=1 // pred_check
      _
    $region3: #{tpu_custom_call.1} parent=1 // pred_check_branch
      %18 = sbr.rel (0) target = $region5
    $region4: #{tpu_custom_call.1} parent=1 // pred_region
      %s20 = ssub.s32 1024, 1024
      %21 = vsyncadd [#allocation3], %s20
      %s22 = sshll.u32 [#allocation2], 4
      %s23 = int_to_ptr.vmem [resolvable:$true] %s22
      %28 = dma.hbm_to_vmem [thread:$0]  %s0, 1024, %s23, [#allocation3], 128, 128, 8
    $region5: #{tpu_custom_call.1} parent=1 // pred_fallthru
      _
    // Predicated region
    $region6: #{tpu_custom_call.1} parent=1 // pred_check
      _
    $region7: #{tpu_custom_call.1} parent=1 // pred_check_branch
      %30 = sbr.rel (0) target = $region9
    $region8: #{tpu_custom_call.1} parent=1 // pred_region
      %s32 = ssub.s32 8192, 8192
      %33 = vsyncadd [#allocation6], %s32
      %s34 = sshll.u32 [#allocation5], 4
      %s35 = int_to_ptr.vmem [resolvable:$true] %s34
      %40 = dma.hbm_to_vmem [thread:$0]  %s1, 8192, %s35, [#allocation6], 512, 512, 32
    $region9: #{tpu_custom_call.1} parent=1 // pred_fallthru
      _
    // Predicated region
    $region10: #{tpu_custom_call.1} parent=1 // pred_check
      _
    $region11: #{tpu_custom_call.1} parent=1 // pred_check_branch
      %42 = sbr.rel (0) target = $region13
    $region12: #{tpu_custom_call.1} parent=1 // pred_region
      %s44 = ssub.s32 8192, 8192
      %45 = vsyncadd [#allocation6], %s44
      %s46 = sshll.u32 [#allocation7], 4
      %s47 = int_to_ptr.vmem [resolvable:$true] %s46
      %52 = dma.hbm_to_vmem [thread:$0]  %s2, 8192, %s47, [#allocation6], 512, 512, 32
    $region13: #{tpu_custom_call.1} parent=1 // pred_fallthru
      _
    // Predicated region
    $region14: #{tpu_custom_call.1} parent=1 // pred_check
      _
    $region15: #{tpu_custom_call.1} parent=1 // pred_check_branch
      %54 = sbr.rel (0) target = $region17
    $region16: #{tpu_custom_call.1} parent=1 // pred_region
      _
    $region17: #{tpu_custom_call.1} parent=1 // pred_fallthru
      _
    // Predicated region
    $region18: #{tpu_custom_call.1} parent=1 // pred_check
      _
    $region19: #{tpu_custom_call.1} parent=1 // pred_check_branch
      %56 = sbr.rel (0) target = $region21
    $region20: #{tpu_custom_call.1} parent=1 // pred_region
      %s58 = ssub.s32 4096, 4096
      %59 = vsyncadd [#allocation9], %s58
      %s60 = sshll.u32 [#allocation8], 4
      %s61 = int_to_ptr.vmem [resolvable:$true] %s60
      %66 = dma.hbm_to_vmem [thread:$0]  %s4, 4096, %s61, [#allocation9], 128, 128, 8
    $region21: #{tpu_custom_call.1} parent=1 // pred_fallthru
      _
    // Predicated region
    $region22: #{tpu_custom_call.1} parent=1 // pred_check
      _
    $region23: #{tpu_custom_call.1} parent=1 // pred_check_branch
      %68 = sbr.rel (0) target = $region25
    $region24: #{tpu_custom_call.1} parent=1 // pred_region
      _
    $region25: #{tpu_custom_call.1} parent=1 // pred_fallthru
      _
    // Predicated region
    $region26: #{tpu_custom_call.1} parent=1 // pred_check
      _
    $region27: #{tpu_custom_call.1} parent=1 // pred_check_branch
      %70 = sbr.rel (0) target = $region29
    $region28: #{tpu_custom_call.1} parent=1 // pred_region
      %s72 = ssub.s32 2048, 2048
      %73 = vsyncadd [#allocation9], %s72
      %s74 = sshll.u32 [#allocation10], 4
      %s75 = int_to_ptr.vmem [resolvable:$true] %s74
      %80 = dma.hbm_to_vmem [thread:$0]  %s6, 2048, %s75, [#allocation9], 128, 128, 8
    $region29: #{tpu_custom_call.1} parent=1 // pred_fallthru
      _
    // Predicated region
    $region30: #{tpu_custom_call.1} parent=1 // pred_check
      _
    $region31: #{tpu_custom_call.1} parent=1 // pred_check_branch
      %82 = sbr.rel (0) target = $region33
    $region32: #{tpu_custom_call.1} parent=1 // pred_region
      _
    $region33: #{tpu_custom_call.1} parent=1 // pred_fallthru
      _
    // Predicated region
    $region34: #{tpu_custom_call.1} parent=1 // pred_check
      _
    $region35: #{tpu_custom_call.1} parent=1 // pred_check_branch
      %84 = sbr.rel (0) target = $region37
    $region36: #{tpu_custom_call.1} parent=1 // pred_region
      %85 = dma.done [#allocation3], 1024
    $region37: #{tpu_custom_call.1} parent=1 // pred_fallthru
      _
    // Predicated region
    $region38: #{tpu_custom_call.1} parent=1 // pred_check
      _
    $region39: #{tpu_custom_call.1} parent=1 // pred_check_branch
      %87 = sbr.rel (0) target = $region41
    $region40: #{tpu_custom_call.1} parent=1 // pred_region
      %88 = dma.done [#allocation6], 8192
    $region41: #{tpu_custom_call.1} parent=1 // pred_fallthru
      _
    // Predicated region
    $region42: #{tpu_custom_call.1} parent=1 // pred_check
      _
    $region43: #{tpu_custom_call.1} parent=1 // pred_check_branch
      %90 = sbr.rel (0) target = $region45
    $region44: #{tpu_custom_call.1} parent=1 // pred_region
      %91 = dma.done [#allocation6], 8192
    $region45: #{tpu_custom_call.1} parent=1 // pred_fallthru
      _
    // Predicated region
    $region46: #{tpu_custom_call.1} parent=1 // pred_check
      _
    $region47: #{tpu_custom_call.1} parent=1 // pred_check_branch
      %93 = sbr.rel (0) target = $region49
    $region48: #{tpu_custom_call.1} parent=1 // pred_region
      %94 = dma.done [#allocation9], 4096
    $region49: #{tpu_custom_call.1} parent=1 // pred_fallthru
      _
    // Predicated region
    $region50: #{tpu_custom_call.1} parent=1 // pred_check
      _
    $region51: #{tpu_custom_call.1} parent=1 // pred_check_branch
      %96 = sbr.rel (0) target = $region53
    $region52: #{tpu_custom_call.1} parent=1 // pred_region
      %97 = dma.done [#allocation9], 2048
    $region53: #{tpu_custom_call.1} parent=1 // pred_fallthru
      _
    %v98 = vld [vmem:[#allocation2] sm:$0xff]
    %v99 = vld [vmem:[#allocation2 + $0x8] sm:$0xff]
    %v100 = vld [vmem:[#allocation2 + $0x10] sm:$0xff]
    %v101 = vld [vmem:[#allocation2 + $0x18] sm:$0xff]
    %v102 = vld [vmem:[#allocation2 + $0x20] sm:$0xff]
    %v103 = vld [vmem:[#allocation2 + $0x28] sm:$0xff]
    %v104 = vld [vmem:[#allocation2 + $0x30] sm:$0xff]
    %v105 = vld [vmem:[#allocation2 + $0x38] sm:$0xff]
    %v106 = vld [vmem:[#allocation5] sm:$0xff]
    %v107 = vld [vmem:[#allocation5 + $0x8] sm:$0xff]
    %v108 = vld [vmem:[#allocation5 + $0x10] sm:$0xff]
    %v109 = vld [vmem:[#allocation5 + $0x18] sm:$0xff]
    %v110 = vld [vmem:[#allocation5 + $0x20] sm:$0xff]
    %v111 = vld [vmem:[#allocation5 + $0x28] sm:$0xff]
    %v112 = vld [vmem:[#allocation5 + $0x30] sm:$0xff]
    %v113 = vld [vmem:[#allocation5 + $0x38] sm:$0xff]
    %v114 = vld [vmem:[#allocation5 + $0x40] sm:$0xff]
    %v115 = vld [vmem:[#allocation5 + $0x48] sm:$0xff]
    %v116 = vld [vmem:[#allocation5 + $0x50] sm:$0xff]
    %v117 = vld [vmem:[#allocation5 + $0x58] sm:$0xff]
    %v118 = vld [vmem:[#allocation5 + $0x60] sm:$0xff]
    %v119 = vld [vmem:[#allocation5 + $0x68] sm:$0xff]
    %v120 = vld [vmem:[#allocation5 + $0x70] sm:$0xff]
    %v121 = vld [vmem:[#allocation5 + $0x78] sm:$0xff]
    %v122 = vld [vmem:[#allocation5 + $0x80] sm:$0xff]
    %v123 = vld [vmem:[#allocation5 + $0x88] sm:$0xff]
    %v124 = vld [vmem:[#allocation5 + $0x90] sm:$0xff]
    %v125 = vld [vmem:[#allocation5 + $0x98] sm:$0xff]
    %v126 = vld [vmem:[#allocation5 + $0xa0] sm:$0xff]
    %v127 = vld [vmem:[#allocation5 + $0xa8] sm:$0xff]
    %v128 = vld [vmem:[#allocation5 + $0xb0] sm:$0xff]
    %v129 = vld [vmem:[#allocation5 + $0xb8] sm:$0xff]
    %v130 = vld [vmem:[#allocation5 + $0xc0] sm:$0xff]
    %v131 = vld [vmem:[#allocation5 + $0xc8] sm:$0xff]
    %v132 = vld [vmem:[#allocation5 + $0xd0] sm:$0xff]
    %v133 = vld [vmem:[#allocation5 + $0xd8] sm:$0xff]
    %v134 = vld [vmem:[#allocation5 + $0xe0] sm:$0xff]
    %v135 = vld [vmem:[#allocation5 + $0xe8] sm:$0xff]
    %v136 = vld [vmem:[#allocation5 + $0xf0] sm:$0xff]
    %v137 = vld [vmem:[#allocation5 + $0xf8] sm:$0xff]
    %v138 = vld [vmem:[#allocation5 + $0x100] sm:$0xff]
    %v139 = vld [vmem:[#allocation5 + $0x108] sm:$0xff]
    %v140 = vld [vmem:[#allocation5 + $0x110] sm:$0xff]
    %v141 = vld [vmem:[#allocation5 + $0x118] sm:$0xff]
    %v142 = vld [vmem:[#allocation5 + $0x120] sm:$0xff]
    %v143 = vld [vmem:[#allocation5 + $0x128] sm:$0xff]
    %v144 = vld [vmem:[#allocation5 + $0x130] sm:$0xff]
    %v145 = vld [vmem:[#allocation5 + $0x138] sm:$0xff]
    %v146 = vld [vmem:[#allocation5 + $0x140] sm:$0xff]
    %v147 = vld [vmem:[#allocation5 + $0x148] sm:$0xff]
    %v148 = vld [vmem:[#allocation5 + $0x150] sm:$0xff]
    %v149 = vld [vmem:[#allocation5 + $0x158] sm:$0xff]
    %v150 = vld [vmem:[#allocation5 + $0x160] sm:$0xff]
    %v151 = vld [vmem:[#allocation5 + $0x168] sm:$0xff]
    %v152 = vld [vmem:[#allocation5 + $0x170] sm:$0xff]
    %v153 = vld [vmem:[#allocation5 + $0x178] sm:$0xff]
    %v154 = vld [vmem:[#allocation5 + $0x180] sm:$0xff]
    %v155 = vld [vmem:[#allocation5 + $0x188] sm:$0xff]
    %v156 = vld [vmem:[#allocation5 + $0x190] sm:$0xff]
    %v157 = vld [vmem:[#allocation5 + $0x198] sm:$0xff]
    %v158 = vld [vmem:[#allocation5 + $0x1a0] sm:$0xff]
    %v159 = vld [vmem:[#allocation5 + $0x1a8] sm:$0xff]
    %v160 = vld [vmem:[#allocation5 + $0x1b0] sm:$0xff]
    %v161 = vld [vmem:[#allocation5 + $0x1b8] sm:$0xff]
    %v162 = vld [vmem:[#allocation5 + $0x1c0] sm:$0xff]
    %v163 = vld [vmem:[#allocation5 + $0x1c8] sm:$0xff]
    %v164 = vld [vmem:[#allocation5 + $0x1d0] sm:$0xff]
    %v165 = vld [vmem:[#allocation5 + $0x1d8] sm:$0xff]
    %v166 = vld [vmem:[#allocation5 + $0x1e0] sm:$0xff]
    %v167 = vld [vmem:[#allocation5 + $0x1e8] sm:$0xff]
    %v168 = vld [vmem:[#allocation5 + $0x1f0] sm:$0xff]
    %v169 = vld [vmem:[#allocation5 + $0x1f8] sm:$0xff]
    %v170 = vld [vmem:[#allocation7] sm:$0xff]
    %v171 = vld [vmem:[#allocation7 + $0x8] sm:$0xff]
    %v172 = vld [vmem:[#allocation7 + $0x10] sm:$0xff]
    %v173 = vld [vmem:[#allocation7 + $0x18] sm:$0xff]
    %v174 = vld [vmem:[#allocation7 + $0x20] sm:$0xff]
    %v175 = vld [vmem:[#allocation7 + $0x28] sm:$0xff]
    %v176 = vld [vmem:[#allocation7 + $0x30] sm:$0xff]
    %v177 = vld [vmem:[#allocation7 + $0x38] sm:$0xff]
    %v178 = vld [vmem:[#allocation7 + $0x40] sm:$0xff]
    %v179 = vld [vmem:[#allocation7 + $0x48] sm:$0xff]
    %v180 = vld [vmem:[#allocation7 + $0x50] sm:$0xff]
    %v181 = vld [vmem:[#allocation7 + $0x58] sm:$0xff]
    %v182 = vld [vmem:[#allocation7 + $0x60] sm:$0xff]
    %v183 = vld [vmem:[#allocation7 + $0x68] sm:$0xff]
    %v184 = vld [vmem:[#allocation7 + $0x70] sm:$0xff]
    %v185 = vld [vmem:[#allocation7 + $0x78] sm:$0xff]
    %v186 = vld [vmem:[#allocation7 + $0x80] sm:$0xff]
    %v187 = vld [vmem:[#allocation7 + $0x88] sm:$0xff]
    %v188 = vld [vmem:[#allocation7 + $0x90] sm:$0xff]
    %v189 = vld [vmem:[#allocation7 + $0x98] sm:$0xff]
    %v190 = vld [vmem:[#allocation7 + $0xa0] sm:$0xff]
    %v191 = vld [vmem:[#allocation7 + $0xa8] sm:$0xff]
    %v192 = vld [vmem:[#allocation7 + $0xb0] sm:$0xff]
    %v193 = vld [vmem:[#allocation7 + $0xb8] sm:$0xff]
    %v194 = vld [vmem:[#allocation7 + $0xc0] sm:$0xff]
    %v195 = vld [vmem:[#allocation7 + $0xc8] sm:$0xff]
    %v196 = vld [vmem:[#allocation7 + $0xd0] sm:$0xff]
    %v197 = vld [vmem:[#allocation7 + $0xd8] sm:$0xff]
    %v198 = vld [vmem:[#allocation7 + $0xe0] sm:$0xff]
    %v199 = vld [vmem:[#allocation7 + $0xe8] sm:$0xff]
    %v200 = vld [vmem:[#allocation7 + $0xf0] sm:$0xff]
    %v201 = vld [vmem:[#allocation7 + $0xf8] sm:$0xff]
    %v202 = vld [vmem:[#allocation7 + $0x100] sm:$0xff]
    %v203 = vld [vmem:[#allocation7 + $0x108] sm:$0xff]
    %v204 = vld [vmem:[#allocation7 + $0x110] sm:$0xff]
    %v205 = vld [vmem:[#allocation7 + $0x118] sm:$0xff]
    %v206 = vld [vmem:[#allocation7 + $0x120] sm:$0xff]
    %v207 = vld [vmem:[#allocation7 + $0x128] sm:$0xff]
    %v208 = vld [vmem:[#allocation7 + $0x130] sm:$0xff]
    %v209 = vld [vmem:[#allocation7 + $0x138] sm:$0xff]
    %v210 = vld [vmem:[#allocation7 + $0x140] sm:$0xff]
    %v211 = vld [vmem:[#allocation7 + $0x148] sm:$0xff]
    %v212 = vld [vmem:[#allocation7 + $0x150] sm:$0xff]
    %v213 = vld [vmem:[#allocation7 + $0x158] sm:$0xff]
    %v214 = vld [vmem:[#allocation7 + $0x160] sm:$0xff]
    %v215 = vld [vmem:[#allocation7 + $0x168] sm:$0xff]
    %v216 = vld [vmem:[#allocation7 + $0x170] sm:$0xff]
    %v217 = vld [vmem:[#allocation7 + $0x178] sm:$0xff]
    %v218 = vld [vmem:[#allocation7 + $0x180] sm:$0xff]
    %v219 = vld [vmem:[#allocation7 + $0x188] sm:$0xff]
    %v220 = vld [vmem:[#allocation7 + $0x190] sm:$0xff]
    %v221 = vld [vmem:[#allocation7 + $0x198] sm:$0xff]
    %v222 = vld [vmem:[#allocation7 + $0x1a0] sm:$0xff]
    %v223 = vld [vmem:[#allocation7 + $0x1a8] sm:$0xff]
    %v224 = vld [vmem:[#allocation7 + $0x1b0] sm:$0xff]
    %v225 = vld [vmem:[#allocation7 + $0x1b8] sm:$0xff]
    %v226 = vld [vmem:[#allocation7 + $0x1c0] sm:$0xff]
    %v227 = vld [vmem:[#allocation7 + $0x1c8] sm:$0xff]
    %v228 = vld [vmem:[#allocation7 + $0x1d0] sm:$0xff]
    %v229 = vld [vmem:[#allocation7 + $0x1d8] sm:$0xff]
    %v230 = vld [vmem:[#allocation7 + $0x1e0] sm:$0xff]
    %v231 = vld [vmem:[#allocation7 + $0x1e8] sm:$0xff]
    %v232 = vld [vmem:[#allocation7 + $0x1f0] sm:$0xff]
    %v233 = vld [vmem:[#allocation7 + $0x1f8] sm:$0xff]
    %v234 = vld [vmem:[%s3] sm:$0xf]
    %v236 = vlaneseq
    %v237 = vshrl.u32 %v236, 7
    %v238 = vsub.s32 0, %v237
    %v239 = vrot.slane %v234, %v238
    %v240 = vlaneseq
    %v241 = vshrl.u32 %v240, 7
    %v242 = vsub.s32 1, %v241
    %v243 = vrot.slane %v234, %v242
    %v244 = vlaneseq
    %v245 = vshrl.u32 %v244, 7
    %v246 = vsub.s32 2, %v245
    %v247 = vrot.slane %v234, %v246
    %v248 = vlaneseq
    %v249 = vshrl.u32 %v248, 7
    %v250 = vsub.s32 3, %v249
    %v251 = vrot.slane %v234, %v250
    %256 = vmatprep.subr.mxu0 %v107
    %257 = vmatpush1.msra.mxu0 %v106
    %258 = vmatprep.subr.mxu0 %v111
    %259 = vmatpush1.msra.mxu0 %v110
    %260 = vmatprep.subr.mxu0 %v115
    %261 = vmatpush1.msra.mxu0 %v114
    %262 = vmatprep.subr.mxu0 %v119
    %263 = vmatpush1.msra.mxu0 %v118
    %264 = vmatprep.subr.mxu0 %v123
    %265 = vmatpush1.msra.mxu0 %v122
    %266 = vmatprep.subr.mxu0 %v127
    %267 = vmatpush1.msra.mxu0 %v126
    %268 = vmatprep.subr.mxu0 %v131
    %269 = vmatpush1.msra.mxu0 %v130
    %270 = vmatprep.subr.mxu0 %v135
    %271 = vmatpush1.msra.mxu0 %v134
    %272 = vmatprep.subr.mxu0 %v139
    %273 = vmatpush1.msra.mxu0 %v138
    %274 = vmatprep.subr.mxu0 %v143
    %275 = vmatpush1.msra.mxu0 %v142
    %276 = vmatprep.subr.mxu0 %v147
    %277 = vmatpush1.msra.mxu0 %v146
    %278 = vmatprep.subr.mxu0 %v151
    %279 = vmatpush1.msra.mxu0 %v150
    %280 = vmatprep.subr.mxu0 %v155
    %281 = vmatpush1.msra.mxu0 %v154
    %282 = vmatprep.subr.mxu0 %v159
    %283 = vmatpush1.msra.mxu0 %v158
    %284 = vmatprep.subr.mxu0 %v163
    %285 = vmatpush1.msra.mxu0 %v162
    %286 = vmatprep.subr.mxu0 %v167
    %287 = vmatpush1.msra.mxu0 %v166
    %288 = vmatprep.subr.mxu0 0.0
    %289 = vmatpush1.msra.mxu0 0.0
    %290 = vmatprep.subr.mxu0 0.0
    %291 = vmatpush1.msra.mxu0 0.0
    %292 = vmatprep.subr.mxu0 0.0
    %293 = vmatpush1.msra.mxu0 0.0
    %294 = vmatprep.subr.mxu0 0.0
    %295 = vmatpush1.msra.mxu0 0.0
    %296 = vmatprep.subr.mxu0 0.0
    %297 = vmatpush1.msra.mxu0 0.0
    %298 = vmatprep.subr.mxu0 0.0
    %299 = vmatpush1.msra.mxu0 0.0
    %300 = vmatprep.subr.mxu0 0.0
    %301 = vmatpush1.msra.mxu0 0.0
    %302 = vmatprep.subr.mxu0 0.0
    %303 = vmatpush1.msra.mxu0 0.0
    %304 = vmatprep.subr.mxu0 0.0
    %305 = vmatpush1.msra.mxu0 0.0
    %306 = vmatprep.subr.mxu0 0.0
    %307 = vmatpush1.msra.mxu0 0.0
    %308 = vmatprep.subr.mxu0 0.0
    %309 = vmatpush1.msra.mxu0 0.0
    %310 = vmatprep.subr.mxu0 0.0
    %311 = vmatpush1.msra.mxu0 0.0
    %312 = vmatprep.subr.mxu0 0.0
    %313 = vmatpush1.msra.mxu0 0.0
    %314 = vmatprep.subr.mxu0 0.0
    %315 = vmatpush1.msra.mxu0 0.0
    %316 = vmatprep.subr.mxu0 0.0
    %317 = vmatpush1.msra.mxu0 0.0
    %318 = vmatprep.subr.mxu0 0.0
    %319 = vmatpush1.msra.mxu0 0.0
    %320 = vmatprep.mubr.f32.mxu0 0.0
    %321 = vmatmul.mubr.f32.gmra.mrb[0].mxu0 %v98
    %v322 = vpop.f32.mrb[0].mxu0
    %v323 = vadd.f32 %v239, %v322
    %v324 = vpop.f32.mrb[0].mxu0
    %v325 = vadd.f32 %v243, %v324
    %326 = vmatprep.mubr.f32.mxu0 0.0
    %327 = vmatmul.mubr.f32.gmra.mrb[0].mxu0 %v99
    %v328 = vpop.f32.mrb[0].mxu0
    %v329 = vadd.f32 %v239, %v328
    %v330 = vpop.f32.mrb[0].mxu0
    %v331 = vadd.f32 %v243, %v330
    %332 = vmatprep.mubr.f32.mxu0 0.0
    %333 = vmatmul.mubr.f32.gmra.mrb[0].mxu0 %v100
    %v334 = vpop.f32.mrb[0].mxu0
    %v335 = vadd.f32 %v239, %v334
    %v336 = vpop.f32.mrb[0].mxu0
    %v337 = vadd.f32 %v243, %v336
    %338 = vmatprep.mubr.f32.mxu0 0.0
    %339 = vmatmul.mubr.f32.gmra.mrb[0].mxu0 %v101
    %v340 = vpop.f32.mrb[0].mxu0
    %v341 = vadd.f32 %v239, %v340
    %v342 = vpop.f32.mrb[0].mxu0
    %v343 = vadd.f32 %v243, %v342
    %344 = vmatprep.mubr.f32.mxu0 0.0
    %345 = vmatmul.mubr.f32.gmra.mrb[0].mxu0 %v102
    %v346 = vpop.f32.mrb[0].mxu0
    %v347 = vadd.f32 %v239, %v346
    %v348 = vpop.f32.mrb[0].mxu0
    %v349 = vadd.f32 %v243, %v348
    %350 = vmatprep.mubr.f32.mxu0 0.0
    %351 = vmatmul.mubr.f32.gmra.mrb[0].mxu0 %v103
    %v352 = vpop.f32.mrb[0].mxu0
    %v353 = vadd.f32 %v239, %v352
    %v354 = vpop.f32.mrb[0].mxu0
    %v355 = vadd.f32 %v243, %v354
    %356 = vmatprep.mubr.f32.mxu0 0.0
    %357 = vmatmul.mubr.f32.gmra.mrb[0].mxu0 %v104
    %v358 = vpop.f32.mrb[0].mxu0
    %v359 = vadd.f32 %v239, %v358
    %v360 = vpop.f32.mrb[0].mxu0
    %v361 = vadd.f32 %v243, %v360
    %362 = vmatprep.mubr.f32.mxu0 0.0
    %363 = vmatmul.mubr.f32.gmra.mrb[0].mxu0 %v105
    %v364 = vpop.f32.mrb[0].mxu0
    %v365 = vadd.f32 %v239, %v364
    %v366 = vpop.f32.mrb[0].mxu0
    %v367 = vadd.f32 %v243, %v366
    %368 = vdwg.mxu0
    %369 = vmatprep.subr.mxu0 %v109
    %370 = vmatpush1.msra.mxu0 %v108
    %371 = vmatprep.subr.mxu0 %v113
    %372 = vmatpush1.msra.mxu0 %v112
    %373 = vmatprep.subr.mxu0 %v117
    %374 = vmatpush1.msra.mxu0 %v116
    %375 = vmatprep.subr.mxu0 %v121
    %376 = vmatpush1.msra.mxu0 %v120
    %377 = vmatprep.subr.mxu0 %v125
    %378 = vmatpush1.msra.mxu0 %v124
    %379 = vmatprep.subr.mxu0 %v129
    %380 = vmatpush1.msra.mxu0 %v128
    %381 = vmatprep.subr.mxu0 %v133
    %382 = vmatpush1.msra.mxu0 %v132
    %383 = vmatprep.subr.mxu0 %v137
    %384 = vmatpush1.msra.mxu0 %v136
    %385 = vmatprep.subr.mxu0 %v141
    %386 = vmatpush1.msra.mxu0 %v140
    %387 = vmatprep.subr.mxu0 %v145
    %388 = vmatpush1.msra.mxu0 %v144
    %389 = vmatprep.subr.mxu0 %v149
    %390 = vmatpush1.msra.mxu0 %v148
    %391 = vmatprep.subr.mxu0 %v153
    %392 = vmatpush1.msra.mxu0 %v152
    %393 = vmatprep.subr.mxu0 %v157
    %394 = vmatpush1.msra.mxu0 %v156
    %395 = vmatprep.subr.mxu0 %v161
    %396 = vmatpush1.msra.mxu0 %v160
    %397 = vmatprep.subr.mxu0 %v165
    %398 = vmatpush1.msra.mxu0 %v164
    %399 = vmatprep.subr.mxu0 %v169
    %400 = vmatpush1.msra.mxu0 %v168
    %401 = vmatprep.subr.mxu0 0.0
    %402 = vmatpush1.msra.mxu0 0.0
    %403 = vmatprep.subr.mxu0 0.0
    %404 = vmatpush1.msra.mxu0 0.0
    %405 = vmatprep.subr.mxu0 0.0
    %406 = vmatpush1.msra.mxu0 0.0
    %407 = vmatprep.subr.mxu0 0.0
    %408 = vmatpush1.msra.mxu0 0.0
    %409 = vmatprep.subr.mxu0 0.0
    %410 = vmatpush1.msra.mxu0 0.0
    %411 = vmatprep.subr.mxu0 0.0
    %412 = vmatpush1.msra.mxu0 0.0
    %413 = vmatprep.subr.mxu0 0.0
    %414 = vmatpush1.msra.mxu0 0.0
    %415 = vmatprep.subr.mxu0 0.0
    %416 = vmatpush1.msra.mxu0 0.0
    %417 = vmatprep.subr.mxu0 0.0
    %418 = vmatpush1.msra.mxu0 0.0
    %419 = vmatprep.subr.mxu0 0.0
    %420 = vmatpush1.msra.mxu0 0.0
    %421 = vmatprep.subr.mxu0 0.0
    %422 = vmatpush1.msra.mxu0 0.0
    %423 = vmatprep.subr.mxu0 0.0
    %424 = vmatpush1.msra.mxu0 0.0
    %425 = vmatprep.subr.mxu0 0.0
    %426 = vmatpush1.msra.mxu0 0.0
    %427 = vmatprep.subr.mxu0 0.0
    %428 = vmatpush1.msra.mxu0 0.0
    %429 = vmatprep.subr.mxu0 0.0
    %430 = vmatpush1.msra.mxu0 0.0
    %431 = vmatprep.subr.mxu0 0.0
    %432 = vmatpush1.msra.mxu0 0.0
    %433 = vmatprep.mubr.f32.mxu0 0.0
    %434 = vmatmul.mubr.f32.gmra.mrb[0].mxu0 %v98
    %v435 = vpop.f32.mrb[0].mxu0
    %v436 = vadd.f32 %v247, %v435
    %v437 = vpop.f32.mrb[0].mxu0
    %v438 = vadd.f32 %v251, %v437
    %439 = vmatprep.mubr.f32.mxu0 0.0
    %440 = vmatmul.mubr.f32.gmra.mrb[0].mxu0 %v99
    %v441 = vpop.f32.mrb[0].mxu0
    %v442 = vadd.f32 %v247, %v441
    %v443 = vpop.f32.mrb[0].mxu0
    %v444 = vadd.f32 %v251, %v443
    %445 = vmatprep.mubr.f32.mxu0 0.0
    %446 = vmatmul.mubr.f32.gmra.mrb[0].mxu0 %v100
    %v447 = vpop.f32.mrb[0].mxu0
    %v448 = vadd.f32 %v247, %v447
    %v449 = vpop.f32.mrb[0].mxu0
    %v450 = vadd.f32 %v251, %v449
    %451 = vmatprep.mubr.f32.mxu0 0.0
    %452 = vmatmul.mubr.f32.gmra.mrb[0].mxu0 %v101
    %v453 = vpop.f32.mrb[0].mxu0
    %v454 = vadd.f32 %v247, %v453
    %v455 = vpop.f32.mrb[0].mxu0
    %v456 = vadd.f32 %v251, %v455
    %457 = vmatprep.mubr.f32.mxu0 0.0
    %458 = vmatmul.mubr.f32.gmra.mrb[0].mxu0 %v102
    %v459 = vpop.f32.mrb[0].mxu0
    %v460 = vadd.f32 %v247, %v459
    %v461 = vpop.f32.mrb[0].mxu0
    %v462 = vadd.f32 %v251, %v461
    %463 = vmatprep.mubr.f32.mxu0 0.0
    %464 = vmatmul.mubr.f32.gmra.mrb[0].mxu0 %v103
    %v465 = vpop.f32.mrb[0].mxu0
    %v466 = vadd.f32 %v247, %v465
    %v467 = vpop.f32.mrb[0].mxu0
    %v468 = vadd.f32 %v251, %v467
    %469 = vmatprep.mubr.f32.mxu0 0.0
    %470 = vmatmul.mubr.f32.gmra.mrb[0].mxu0 %v104
    %v471 = vpop.f32.mrb[0].mxu0
    %v472 = vadd.f32 %v247, %v471
    %v473 = vpop.f32.mrb[0].mxu0
    %v474 = vadd.f32 %v251, %v473
    %475 = vmatprep.mubr.f32.mxu0 0.0
    %476 = vmatmul.mubr.f32.gmra.mrb[0].mxu0 %v105
    %v477 = vpop.f32.mrb[0].mxu0
    %v478 = vadd.f32 %v247, %v477
    %v479 = vpop.f32.mrb[0].mxu0
    %v480 = vadd.f32 %v251, %v479
    %481 = vdwg.mxu0
    %482 = vmatprep.subr.mxu0 %v171
    %483 = vmatpush1.msra.mxu0 %v170
    %484 = vmatprep.subr.mxu0 %v175
    %485 = vmatpush1.msra.mxu0 %v174
    %486 = vmatprep.subr.mxu0 %v179
    %487 = vmatpush1.msra.mxu0 %v178
    %488 = vmatprep.subr.mxu0 %v183
    %489 = vmatpush1.msra.mxu0 %v182
    %490 = vmatprep.subr.mxu0 %v187
    %491 = vmatpush1.msra.mxu0 %v186
    %492 = vmatprep.subr.mxu0 %v191
    %493 = vmatpush1.msra.mxu0 %v190
    %494 = vmatprep.subr.mxu0 %v195
    %495 = vmatpush1.msra.mxu0 %v194
    %496 = vmatprep.subr.mxu0 %v199
    %497 = vmatpush1.msra.mxu0 %v198
    %498 = vmatprep.subr.mxu0 %v203
    %499 = vmatpush1.msra.mxu0 %v202
    %500 = vmatprep.subr.mxu0 %v207
    %501 = vmatpush1.msra.mxu0 %v206
    %502 = vmatprep.subr.mxu0 %v211
    %503 = vmatpush1.msra.mxu0 %v210
    %504 = vmatprep.subr.mxu0 %v215
    %505 = vmatpush1.msra.mxu0 %v214
    %506 = vmatprep.subr.mxu0 %v219
    %507 = vmatpush1.msra.mxu0 %v218
    %508 = vmatprep.subr.mxu0 %v223
    %509 = vmatpush1.msra.mxu0 %v222
    %510 = vmatprep.subr.mxu0 %v227
    %511 = vmatpush1.msra.mxu0 %v226
    %512 = vmatprep.subr.mxu0 %v231
    %513 = vmatpush1.msra.mxu0 %v230
    %514 = vmatprep.subr.mxu0 0.0
    %515 = vmatpush1.msra.mxu0 0.0
    %516 = vmatprep.subr.mxu0 0.0
    %517 = vmatpush1.msra.mxu0 0.0
    %518 = vmatprep.subr.mxu0 0.0
    %519 = vmatpush1.msra.mxu0 0.0
    %520 = vmatprep.subr.mxu0 0.0
    %521 = vmatpush1.msra.mxu0 0.0
    %522 = vmatprep.subr.mxu0 0.0
    %523 = vmatpush1.msra.mxu0 0.0
    %524 = vmatprep.subr.mxu0 0.0
    %525 = vmatpush1.msra.mxu0 0.0
    %526 = vmatprep.subr.mxu0 0.0
    %527 = vmatpush1.msra.mxu0 0.0
    %528 = vmatprep.subr.mxu0 0.0
    %529 = vmatpush1.msra.mxu0 0.0
    %530 = vmatprep.subr.mxu0 0.0
    %531 = vmatpush1.msra.mxu0 0.0
    %532 = vmatprep.subr.mxu0 0.0
    %533 = vmatpush1.msra.mxu0 0.0
    %534 = vmatprep.subr.mxu0 0.0
    %535 = vmatpush1.msra.mxu0 0.0
    %536 = vmatprep.subr.mxu0 0.0
    %537 = vmatpush1.msra.mxu0 0.0
    %538 = vmatprep.subr.mxu0 0.0
    %539 = vmatpush1.msra.mxu0 0.0
    %540 = vmatprep.subr.mxu0 0.0
    %541 = vmatpush1.msra.mxu0 0.0
    %542 = vmatprep.subr.mxu0 0.0
    %543 = vmatpush1.msra.mxu0 0.0
    %544 = vmatprep.subr.mxu0 0.0
    %545 = vmatpush1.msra.mxu0 0.0
    %546 = vmatprep.mubr.f32.mxu0 0.0
    %547 = vmatmul.mubr.f32.gmra.mrb[0].mxu0 0.0
    %v548 = vpop.f32.mrb[0].mxu0
    %v549 = vadd.f32 0.0, %v548
    %v550 = vpop.f32.mrb[0].mxu0
    %v551 = vadd.f32 0.0, %v550
    %552 = vdwg.mxu0
    %553 = vmatprep.subr.mxu0 %v173
    %554 = vmatpush1.msra.mxu0 %v172
    %555 = vmatprep.subr.mxu0 %v177
    %556 = vmatpush1.msra.mxu0 %v176
    %557 = vmatprep.subr.mxu0 %v181
    %558 = vmatpush1.msra.mxu0 %v180
    %559 = vmatprep.subr.mxu0 %v185
    %560 = vmatpush1.msra.mxu0 %v184
    %561 = vmatprep.subr.mxu0 %v189
    %562 = vmatpush1.msra.mxu0 %v188
    %563 = vmatprep.subr.mxu0 %v193
    %564 = vmatpush1.msra.mxu0 %v192
    %565 = vmatprep.subr.mxu0 %v197
    %566 = vmatpush1.msra.mxu0 %v196
    %567 = vmatprep.subr.mxu0 %v201
    %568 = vmatpush1.msra.mxu0 %v200
    %569 = vmatprep.subr.mxu0 %v205
    %570 = vmatpush1.msra.mxu0 %v204
    %571 = vmatprep.subr.mxu0 %v209
    %572 = vmatpush1.msra.mxu0 %v208
    %573 = vmatprep.subr.mxu0 %v213
    %574 = vmatpush1.msra.mxu0 %v212
    %575 = vmatprep.subr.mxu0 %v217
    %576 = vmatpush1.msra.mxu0 %v216
    %577 = vmatprep.subr.mxu0 %v221
    %578 = vmatpush1.msra.mxu0 %v220
    %579 = vmatprep.subr.mxu0 %v225
    %580 = vmatpush1.msra.mxu0 %v224
    %581 = vmatprep.subr.mxu0 %v229
    %582 = vmatpush1.msra.mxu0 %v228
    %583 = vmatprep.subr.mxu0 %v233
    %584 = vmatpush1.msra.mxu0 %v232
    %585 = vmatprep.subr.mxu0 0.0
    %586 = vmatpush1.msra.mxu0 0.0
    %587 = vmatprep.subr.mxu0 0.0
    %588 = vmatpush1.msra.mxu0 0.0
    %589 = vmatprep.subr.mxu0 0.0
    %590 = vmatpush1.msra.mxu0 0.0
    %591 = vmatprep.subr.mxu0 0.0
    %592 = vmatpush1.msra.mxu0 0.0
    %593 = vmatprep.subr.mxu0 0.0
    %594 = vmatpush1.msra.mxu0 0.0
    %595 = vmatprep.subr.mxu0 0.0
    %596 = vmatpush1.msra.mxu0 0.0
    %597 = vmatprep.subr.mxu0 0.0
    %598 = vmatpush1.msra.mxu0 0.0
    %599 = vmatprep.subr.mxu0 0.0
    %600 = vmatpush1.msra.mxu0 0.0
    %601 = vmatprep.subr.mxu0 0.0
    %602 = vmatpush1.msra.mxu0 0.0
    %603 = vmatprep.subr.mxu0 0.0
    %604 = vmatpush1.msra.mxu0 0.0
    %605 = vmatprep.subr.mxu0 0.0
    %606 = vmatpush1.msra.mxu0 0.0
    %607 = vmatprep.subr.mxu0 0.0
    %608 = vmatpush1.msra.mxu0 0.0
    %609 = vmatprep.subr.mxu0 0.0
    %610 = vmatpush1.msra.mxu0 0.0
    %611 = vmatprep.subr.mxu0 0.0
    %612 = vmatpush1.msra.mxu0 0.0
    %613 = vmatprep.subr.mxu0 0.0
    %614 = vmatpush1.msra.mxu0 0.0
    %615 = vmatprep.subr.mxu0 0.0
    %616 = vmatpush1.msra.mxu0 0.0
    %617 = vmatprep.mubr.f32.mxu0 0.0
    %618 = vmatmul.mubr.f32.gmra.mrb[0].mxu0 0.0
    %v619 = vpop.f32.mrb[0].mxu0
    %v620 = vadd.f32 0.0, %v619
    %v621 = vpop.f32.mrb[0].mxu0
    %v622 = vadd.f32 0.0, %v621
    %623 = vdwg.mxu0
    %v624 = vadd.f32 %v323, %v549
    %v625 = vadd.f32 %v325, %v551
    %v626 = vadd.f32 %v436, %v620
    %v627 = vadd.f32 %v438, %v622
    %v628 = vsub.f32 0.0, %v624
    %v629 = vmul.f32 %v628, 1.442695
    %v630 = vpow.pop %v629
    %v631 = vadd.f32 %v630, 1.0
    %v632 = vrcp.pop %v631
    %v633 = vmul.f32 1.0, %v632
    %v634 = vsub.f32 0.0, %v625
    %v635 = vmul.f32 %v634, 1.442695
    %v636 = vpow.pop %v635
    %v637 = vadd.f32 %v636, 1.0
    %v638 = vrcp.pop %v637
    %v639 = vmul.f32 1.0, %v638
    %v640 = vtanh.pop %v626
    %v641 = vsub.f32 0.0, %v627
    %v642 = vmul.f32 %v641, 1.442695
    %v643 = vpow.pop %v642
    %v644 = vadd.f32 %v643, 1.0
    %v645 = vrcp.pop %v644
    %v646 = vmul.f32 1.0, %v645
    %v647 = vmul.f32 %v639, 0.0
    %v648 = vmul.f32 %v633, %v640
    %v649 = vadd.f32 %v647, %v648
    %v650 = vtanh.pop %v649
    %v651 = vmul.f32 %v646, %v650
    %652 = vmatprep.subr.mxu0 %v171
    %653 = vmatpush1.msra.mxu0 %v170
    %654 = vmatprep.subr.mxu0 %v175
    %655 = vmatpush1.msra.mxu0 %v174
    %656 = vmatprep.subr.mxu0 %v179
    %657 = vmatpush1.msra.mxu0 %v178
    %658 = vmatprep.subr.mxu0 %v183
    %659 = vmatpush1.msra.mxu0 %v182
    %660 = vmatprep.subr.mxu0 %v187
    %661 = vmatpush1.msra.mxu0 %v186
    %662 = vmatprep.subr.mxu0 %v191
    %663 = vmatpush1.msra.mxu0 %v190
    %664 = vmatprep.subr.mxu0 %v195
    %665 = vmatpush1.msra.mxu0 %v194
    %666 = vmatprep.subr.mxu0 %v199
    %667 = vmatpush1.msra.mxu0 %v198
    %668 = vmatprep.subr.mxu0 %v203
    %669 = vmatpush1.msra.mxu0 %v202
    %670 = vmatprep.subr.mxu0 %v207
    %671 = vmatpush1.msra.mxu0 %v206
    %672 = vmatprep.subr.mxu0 %v211
    %673 = vmatpush1.msra.mxu0 %v210
    %674 = vmatprep.subr.mxu0 %v215
    %675 = vmatpush1.msra.mxu0 %v214
    %676 = vmatprep.subr.mxu0 %v219
    %677 = vmatpush1.msra.mxu0 %v218
    %678 = vmatprep.subr.mxu0 %v223
    %679 = vmatpush1.msra.mxu0 %v222
    %680 = vmatprep.subr.mxu0 %v227
    %681 = vmatpush1.msra.mxu0 %v226
    %682 = vmatprep.subr.mxu0 %v231
    %683 = vmatpush1.msra.mxu0 %v230
    %684 = vmatprep.subr.mxu0 0.0
    %685 = vmatpush1.msra.mxu0 0.0
    %686 = vmatprep.subr.mxu0 0.0
    %687 = vmatpush1.msra.mxu0 0.0
    %688 = vmatprep.subr.mxu0 0.0
    %689 = vmatpush1.msra.mxu0 0.0
    %690 = vmatprep.subr.mxu0 0.0
    %691 = vmatpush1.msra.mxu0 0.0
    %692 = vmatprep.subr.mxu0 0.0
    %693 = vmatpush1.msra.mxu0 0.0
    %694 = vmatprep.subr.mxu0 0.0
    %695 = vmatpush1.msra.mxu0 0.0
    %696 = vmatprep.subr.mxu0 0.0
    %697 = vmatpush1.msra.mxu0 0.0
    %698 = vmatprep.subr.mxu0 0.0
    %699 = vmatpush1.msra.mxu0 0.0
    %700 = vmatprep.subr.mxu0 0.0
    %701 = vmatpush1.msra.mxu0 0.0
    %702 = vmatprep.subr.mxu0 0.0
    %703 = vmatpush1.msra.mxu0 0.0
    %704 = vmatprep.subr.mxu0 0.0
    %705 = vmatpush1.msra.mxu0 0.0
    %706 = vmatprep.subr.mxu0 0.0
    %707 = vmatpush1.msra.mxu0 0.0
    %708 = vmatprep.subr.mxu0 0.0
    %709 = vmatpush1.msra.mxu0 0.0
    %710 = vmatprep.subr.mxu0 0.0
    %711 = vmatpush1.msra.mxu0 0.0
    %712 = vmatprep.subr.mxu0 0.0
    %713 = vmatpush1.msra.mxu0 0.0
    %714 = vmatprep.subr.mxu0 0.0
    %715 = vmatpush1.msra.mxu0 0.0
    %716 = vmatprep.mubr.f32.mxu0 0.0
    %717 = vmatmul.mubr.f32.gmra.mrb[0].mxu0 %v651
    %v718 = vpop.f32.mrb[0].mxu0
    %v719 = vadd.f32 0.0, %v718
    %v720 = vpop.f32.mrb[0].mxu0
    %v721 = vadd.f32 0.0, %v720
    %722 = vdwg.mxu0
    %723 = vmatprep.subr.mxu0 %v173
    %724 = vmatpush1.msra.mxu0 %v172
    %725 = vmatprep.subr.mxu0 %v177
    %726 = vmatpush1.msra.mxu0 %v176
    %727 = vmatprep.subr.mxu0 %v181
    %728 = vmatpush1.msra.mxu0 %v180
    %729 = vmatprep.subr.mxu0 %v185
    %730 = vmatpush1.msra.mxu0 %v184
    %731 = vmatprep.subr.mxu0 %v189
    %732 = vmatpush1.msra.mxu0 %v188
    %733 = vmatprep.subr.mxu0 %v193
    %734 = vmatpush1.msra.mxu0 %v192
    %735 = vmatprep.subr.mxu0 %v197
    %736 = vmatpush1.msra.mxu0 %v196
    %737 = vmatprep.subr.mxu0 %v201
    %738 = vmatpush1.msra.mxu0 %v200
    %739 = vmatprep.subr.mxu0 %v205
    %740 = vmatpush1.msra.mxu0 %v204
    %741 = vmatprep.subr.mxu0 %v209
    %742 = vmatpush1.msra.mxu0 %v208
    %743 = vmatprep.subr.mxu0 %v213
    %744 = vmatpush1.msra.mxu0 %v212
    %745 = vmatprep.subr.mxu0 %v217
    %746 = vmatpush1.msra.mxu0 %v216
    %747 = vmatprep.subr.mxu0 %v221
    %748 = vmatpush1.msra.mxu0 %v220
    %749 = vmatprep.subr.mxu0 %v225
    %750 = vmatpush1.msra.mxu0 %v224
    %751 = vmatprep.subr.mxu0 %v229
    %752 = vmatpush1.msra.mxu0 %v228
    %753 = vmatprep.subr.mxu0 %v233
    %754 = vmatpush1.msra.mxu0 %v232
    %755 = vmatprep.subr.mxu0 0.0
    %756 = vmatpush1.msra.mxu0 0.0
    %757 = vmatprep.subr.mxu0 0.0
    %758 = vmatpush1.msra.mxu0 0.0
    %759 = vmatprep.subr.mxu0 0.0
    %760 = vmatpush1.msra.mxu0 0.0
    %761 = vmatprep.subr.mxu0 0.0
    %762 = vmatpush1.msra.mxu0 0.0
    %763 = vmatprep.subr.mxu0 0.0
    %764 = vmatpush1.msra.mxu0 0.0
    %765 = vmatprep.subr.mxu0 0.0
    %766 = vmatpush1.msra.mxu0 0.0
    %767 = vmatprep.subr.mxu0 0.0
    %768 = vmatpush1.msra.mxu0 0.0
    %769 = vmatprep.subr.mxu0 0.0
    %770 = vmatpush1.msra.mxu0 0.0
    %771 = vmatprep.subr.mxu0 0.0
    %772 = vmatpush1.msra.mxu0 0.0
    %773 = vmatprep.subr.mxu0 0.0
    %774 = vmatpush1.msra.mxu0 0.0
    %775 = vmatprep.subr.mxu0 0.0
    %776 = vmatpush1.msra.mxu0 0.0
    %777 = vmatprep.subr.mxu0 0.0
    %778 = vmatpush1.msra.mxu0 0.0
    %779 = vmatprep.subr.mxu0 0.0
    %780 = vmatpush1.msra.mxu0 0.0
    %781 = vmatprep.subr.mxu0 0.0
    %782 = vmatpush1.msra.mxu0 0.0
    %783 = vmatprep.subr.mxu0 0.0
    %784 = vmatpush1.msra.mxu0 0.0
    %785 = vmatprep.subr.mxu0 0.0
    %786 = vmatpush1.msra.mxu0 0.0
    %787 = vmatprep.mubr.f32.mxu0 0.0
    %788 = vmatmul.mubr.f32.gmra.mrb[0].mxu0 %v651
    %v789 = vpop.f32.mrb[0].mxu0
    %v790 = vadd.f32 0.0, %v789
    %v791 = vpop.f32.mrb[0].mxu0
    %v792 = vadd.f32 0.0, %v791
    %793 = vdwg.mxu0
    %v794 = vadd.f32 %v329, %v719
    %v795 = vadd.f32 %v331, %v721
    %v796 = vadd.f32 %v442, %v790
    %v797 = vadd.f32 %v444, %v792
    %v798 = vsub.f32 0.0, %v794
    %v799 = vmul.f32 %v798, 1.442695
    %v800 = vpow.pop %v799
    %v801 = vadd.f32 %v800, 1.0
    %v802 = vrcp.pop %v801
    %v803 = vmul.f32 1.0, %v802
    %v804 = vsub.f32 0.0, %v795
    %v805 = vmul.f32 %v804, 1.442695
    %v806 = vpow.pop %v805
    %v807 = vadd.f32 %v806, 1.0
    %v808 = vrcp.pop %v807
    %v809 = vmul.f32 1.0, %v808
    %v810 = vtanh.pop %v796
    %v811 = vsub.f32 0.0, %v797
    %v812 = vmul.f32 %v811, 1.442695
    %v813 = vpow.pop %v812
    %v814 = vadd.f32 %v813, 1.0
    %v815 = vrcp.pop %v814
    %v816 = vmul.f32 1.0, %v815
    %v817 = vmul.f32 %v809, %v649
    %v818 = vmul.f32 %v803, %v810
    %v819 = vadd.f32 %v817, %v818
    %v820 = vtanh.pop %v819
    %v821 = vmul.f32 %v816, %v820
    %822 = vmatprep.subr.mxu0 %v171
    %823 = vmatpush1.msra.mxu0 %v170
    %824 = vmatprep.subr.mxu0 %v175
    %825 = vmatpush1.msra.mxu0 %v174
    %826 = vmatprep.subr.mxu0 %v179
    %827 = vmatpush1.msra.mxu0 %v178
    %828 = vmatprep.subr.mxu0 %v183
    %829 = vmatpush1.msra.mxu0 %v182
    %830 = vmatprep.subr.mxu0 %v187
    %831 = vmatpush1.msra.mxu0 %v186
    %832 = vmatprep.subr.mxu0 %v191
    %833 = vmatpush1.msra.mxu0 %v190
    %834 = vmatprep.subr.mxu0 %v195
    %835 = vmatpush1.msra.mxu0 %v194
    %836 = vmatprep.subr.mxu0 %v199
    %837 = vmatpush1.msra.mxu0 %v198
    %838 = vmatprep.subr.mxu0 %v203
    %839 = vmatpush1.msra.mxu0 %v202
    %840 = vmatprep.subr.mxu0 %v207
    %841 = vmatpush1.msra.mxu0 %v206
    %842 = vmatprep.subr.mxu0 %v211
    %843 = vmatpush1.msra.mxu0 %v210
    %844 = vmatprep.subr.mxu0 %v215
    %845 = vmatpush1.msra.mxu0 %v214
    %846 = vmatprep.subr.mxu0 %v219
    %847 = vmatpush1.msra.mxu0 %v218
    %848 = vmatprep.subr.mxu0 %v223
    %849 = vmatpush1.msra.mxu0 %v222
    %850 = vmatprep.subr.mxu0 %v227
    %851 = vmatpush1.msra.mxu0 %v226
    %852 = vmatprep.subr.mxu0 %v231
    %853 = vmatpush1.msra.mxu0 %v230
    %854 = vmatprep.subr.mxu0 0.0
    %855 = vmatpush1.msra.mxu0 0.0
    %856 = vmatprep.subr.mxu0 0.0
    %857 = vmatpush1.msra.mxu0 0.0
    %858 = vmatprep.subr.mxu0 0.0
    %859 = vmatpush1.msra.mxu0 0.0
    %860 = vmatprep.subr.mxu0 0.0
    %861 = vmatpush1.msra.mxu0 0.0
    %862 = vmatprep.subr.mxu0 0.0
    %863 = vmatpush1.msra.mxu0 0.0
    %864 = vmatprep.subr.mxu0 0.0
    %865 = vmatpush1.msra.mxu0 0.0
    %866 = vmatprep.subr.mxu0 0.0
    %867 = vmatpush1.msra.mxu0 0.0
    %868 = vmatprep.subr.mxu0 0.0
    %869 = vmatpush1.msra.mxu0 0.0
    %870 = vmatprep.subr.mxu0 0.0
    %871 = vmatpush1.msra.mxu0 0.0
    %872 = vmatprep.subr.mxu0 0.0
    %873 = vmatpush1.msra.mxu0 0.0
    %874 = vmatprep.subr.mxu0 0.0
    %875 = vmatpush1.msra.mxu0 0.0
    %876 = vmatprep.subr.mxu0 0.0
    %877 = vmatpush1.msra.mxu0 0.0
    %878 = vmatprep.subr.mxu0 0.0
    %879 = vmatpush1.msra.mxu0 0.0
    %880 = vmatprep.subr.mxu0 0.0
    %881 = vmatpush1.msra.mxu0 0.0
    %882 = vmatprep.subr.mxu0 0.0
    %883 = vmatpush1.msra.mxu0 0.0
    %884 = vmatprep.subr.mxu0 0.0
    %885 = vmatpush1.msra.mxu0 0.0
    %886 = vmatprep.mubr.f32.mxu0 0.0
    %887 = vmatmul.mubr.f32.gmra.mrb[0].mxu0 %v821
    %v888 = vpop.f32.mrb[0].mxu0
    %v889 = vadd.f32 0.0, %v888
    %v890 = vpop.f32.mrb[0].mxu0
    %v891 = vadd.f32 0.0, %v890
    %892 = vdwg.mxu0
    %893 = vmatprep.subr.mxu0 %v173
    %894 = vmatpush1.msra.mxu0 %v172
    %895 = vmatprep.subr.mxu0 %v177
    %896 = vmatpush1.msra.mxu0 %v176
    %897 = vmatprep.subr.mxu0 %v181
    %898 = vmatpush1.msra.mxu0 %v180
    %899 = vmatprep.subr.mxu0 %v185
    %900 = vmatpush1.msra.mxu0 %v184
    %901 = vmatprep.subr.mxu0 %v189
    %902 = vmatpush1.msra.mxu0 %v188
    %903 = vmatprep.subr.mxu0 %v193
    %904 = vmatpush1.msra.mxu0 %v192
    %905 = vmatprep.subr.mxu0 %v197
    %906 = vmatpush1.msra.mxu0 %v196
    %907 = vmatprep.subr.mxu0 %v201
    %908 = vmatpush1.msra.mxu0 %v200
    %909 = vmatprep.subr.mxu0 %v205
    %910 = vmatpush1.msra.mxu0 %v204
    %911 = vmatprep.subr.mxu0 %v209
    %912 = vmatpush1.msra.mxu0 %v208
    %913 = vmatprep.subr.mxu0 %v213
    %914 = vmatpush1.msra.mxu0 %v212
    %915 = vmatprep.subr.mxu0 %v217
    %916 = vmatpush1.msra.mxu0 %v216
    %917 = vmatprep.subr.mxu0 %v221
    %918 = vmatpush1.msra.mxu0 %v220
    %919 = vmatprep.subr.mxu0 %v225
    %920 = vmatpush1.msra.mxu0 %v224
    %921 = vmatprep.subr.mxu0 %v229
    %922 = vmatpush1.msra.mxu0 %v228
    %923 = vmatprep.subr.mxu0 %v233
    %924 = vmatpush1.msra.mxu0 %v232
    %925 = vmatprep.subr.mxu0 0.0
    %926 = vmatpush1.msra.mxu0 0.0
    %927 = vmatprep.subr.mxu0 0.0
    %928 = vmatpush1.msra.mxu0 0.0
    %929 = vmatprep.subr.mxu0 0.0
    %930 = vmatpush1.msra.mxu0 0.0
    %931 = vmatprep.subr.mxu0 0.0
    %932 = vmatpush1.msra.mxu0 0.0
    %933 = vmatprep.subr.mxu0 0.0
    %934 = vmatpush1.msra.mxu0 0.0
    %935 = vmatprep.subr.mxu0 0.0
    %936 = vmatpush1.msra.mxu0 0.0
    %937 = vmatprep.subr.mxu0 0.0
    %938 = vmatpush1.msra.mxu0 0.0
    %939 = vmatprep.subr.mxu0 0.0
    %940 = vmatpush1.msra.mxu0 0.0
    %941 = vmatprep.subr.mxu0 0.0
    %942 = vmatpush1.msra.mxu0 0.0
    %943 = vmatprep.subr.mxu0 0.0
    %944 = vmatpush1.msra.mxu0 0.0
    %945 = vmatprep.subr.mxu0 0.0
    %946 = vmatpush1.msra.mxu0 0.0
    %947 = vmatprep.subr.mxu0 0.0
    %948 = vmatpush1.msra.mxu0 0.0
    %949 = vmatprep.subr.mxu0 0.0
    %950 = vmatpush1.msra.mxu0 0.0
    %951 = vmatprep.subr.mxu0 0.0
    %952 = vmatpush1.msra.mxu0 0.0
    %953 = vmatprep.subr.mxu0 0.0
    %954 = vmatpush1.msra.mxu0 0.0
    %955 = vmatprep.subr.mxu0 0.0
    %956 = vmatpush1.msra.mxu0 0.0
    %957 = vmatprep.mubr.f32.mxu0 0.0
    %958 = vmatmul.mubr.f32.gmra.mrb[0].mxu0 %v821
    %v959 = vpop.f32.mrb[0].mxu0
    %v960 = vadd.f32 0.0, %v959
    %v961 = vpop.f32.mrb[0].mxu0
    %v962 = vadd.f32 0.0, %v961
    %963 = vdwg.mxu0
    %v964 = vadd.f32 %v335, %v889
    %v965 = vadd.f32 %v337, %v891
    %v966 = vadd.f32 %v448, %v960
    %v967 = vadd.f32 %v450, %v962
    %v968 = vsub.f32 0.0, %v964
    %v969 = vmul.f32 %v968, 1.442695
    %v970 = vpow.pop %v969
    %v971 = vadd.f32 %v970, 1.0
    %v972 = vrcp.pop %v971
    %v973 = vmul.f32 1.0, %v972
    %v974 = vsub.f32 0.0, %v965
    %v975 = vmul.f32 %v974, 1.442695
    %v976 = vpow.pop %v975
    %v977 = vadd.f32 %v976, 1.0
    %v978 = vrcp.pop %v977
    %v979 = vmul.f32 1.0, %v978
    %v980 = vtanh.pop %v966
    %v981 = vsub.f32 0.0, %v967
    %v982 = vmul.f32 %v981, 1.442695
    %v983 = vpow.pop %v982
    %v984 = vadd.f32 %v983, 1.0
    %v985 = vrcp.pop %v984
    %v986 = vmul.f32 1.0, %v985
    %v987 = vmul.f32 %v979, %v819
    %v988 = vmul.f32 %v973, %v980
    %v989 = vadd.f32 %v987, %v988
    %v990 = vtanh.pop %v989
    %v991 = vmul.f32 %v986, %v990
    %992 = vmatprep.subr.mxu0 %v171
    %993 = vmatpush1.msra.mxu0 %v170
    %994 = vmatprep.subr.mxu0 %v175
    %995 = vmatpush1.msra.mxu0 %v174
    %996 = vmatprep.subr.mxu0 %v179
    %997 = vmatpush1.msra.mxu0 %v178
    %998 = vmatprep.subr.mxu0 %v183
    %999 = vmatpush1.msra.mxu0 %v182
    %1000 = vmatprep.subr.mxu0 %v187
    %1001 = vmatpush1.msra.mxu0 %v186
    %1002 = vmatprep.subr.mxu0 %v191
    %1003 = vmatpush1.msra.mxu0 %v190
    %1004 = vmatprep.subr.mxu0 %v195
    %1005 = vmatpush1.msra.mxu0 %v194
    %1006 = vmatprep.subr.mxu0 %v199
    %1007 = vmatpush1.msra.mxu0 %v198
    %1008 = vmatprep.subr.mxu0 %v203
    %1009 = vmatpush1.msra.mxu0 %v202
    %1010 = vmatprep.subr.mxu0 %v207
    %1011 = vmatpush1.msra.mxu0 %v206
    %1012 = vmatprep.subr.mxu0 %v211
    %1013 = vmatpush1.msra.mxu0 %v210
    %1014 = vmatprep.subr.mxu0 %v215
    %1015 = vmatpush1.msra.mxu0 %v214
    %1016 = vmatprep.subr.mxu0 %v219
    %1017 = vmatpush1.msra.mxu0 %v218
    %1018 = vmatprep.subr.mxu0 %v223
    %1019 = vmatpush1.msra.mxu0 %v222
    %1020 = vmatprep.subr.mxu0 %v227
    %1021 = vmatpush1.msra.mxu0 %v226
    %1022 = vmatprep.subr.mxu0 %v231
    %1023 = vmatpush1.msra.mxu0 %v230
    %1024 = vmatprep.subr.mxu0 0.0
    %1025 = vmatpush1.msra.mxu0 0.0
    %1026 = vmatprep.subr.mxu0 0.0
    %1027 = vmatpush1.msra.mxu0 0.0
    %1028 = vmatprep.subr.mxu0 0.0
    %1029 = vmatpush1.msra.mxu0 0.0
    %1030 = vmatprep.subr.mxu0 0.0
    %1031 = vmatpush1.msra.mxu0 0.0
    %1032 = vmatprep.subr.mxu0 0.0
    %1033 = vmatpush1.msra.mxu0 0.0
    %1034 = vmatprep.subr.mxu0 0.0
    %1035 = vmatpush1.msra.mxu0 0.0
    %1036 = vmatprep.subr.mxu0 0.0
    %1037 = vmatpush1.msra.mxu0 0.0
    %1038 = vmatprep.subr.mxu0 0.0
    %1039 = vmatpush1.msra.mxu0 0.0
    %1040 = vmatprep.subr.mxu0 0.0
    %1041 = vmatpush1.msra.mxu0 0.0
    %1042 = vmatprep.subr.mxu0 0.0
    %1043 = vmatpush1.msra.mxu0 0.0
    %1044 = vmatprep.subr.mxu0 0.0
    %1045 = vmatpush1.msra.mxu0 0.0
    %1046 = vmatprep.subr.mxu0 0.0
    %1047 = vmatpush1.msra.mxu0 0.0
    %1048 = vmatprep.subr.mxu0 0.0
    %1049 = vmatpush1.msra.mxu0 0.0
    %1050 = vmatprep.subr.mxu0 0.0
    %1051 = vmatpush1.msra.mxu0 0.0
    %1052 = vmatprep.subr.mxu0 0.0
    %1053 = vmatpush1.msra.mxu0 0.0
    %1054 = vmatprep.subr.mxu0 0.0
    %1055 = vmatpush1.msra.mxu0 0.0
    %1056 = vmatprep.mubr.f32.mxu0 0.0
    %1057 = vmatmul.mubr.f32.gmra.mrb[0].mxu0 %v991
    %v1058 = vpop.f32.mrb[0].mxu0
    %v1059 = vadd.f32 0.0, %v1058
    %v1060 = vpop.f32.mrb[0].mxu0
    %v1061 = vadd.f32 0.0, %v1060
    %1062 = vdwg.mxu0
    %1063 = vmatprep.subr.mxu0 %v173
    %1064 = vmatpush1.msra.mxu0 %v172
    %1065 = vmatprep.subr.mxu0 %v177
    %1066 = vmatpush1.msra.mxu0 %v176
    %1067 = vmatprep.subr.mxu0 %v181
    %1068 = vmatpush1.msra.mxu0 %v180
    %1069 = vmatprep.subr.mxu0 %v185
    %1070 = vmatpush1.msra.mxu0 %v184
    %1071 = vmatprep.subr.mxu0 %v189
    %1072 = vmatpush1.msra.mxu0 %v188
    %1073 = vmatprep.subr.mxu0 %v193
    %1074 = vmatpush1.msra.mxu0 %v192
    %1075 = vmatprep.subr.mxu0 %v197
    %1076 = vmatpush1.msra.mxu0 %v196
    %1077 = vmatprep.subr.mxu0 %v201
    %1078 = vmatpush1.msra.mxu0 %v200
    %1079 = vmatprep.subr.mxu0 %v205
    %1080 = vmatpush1.msra.mxu0 %v204
    %1081 = vmatprep.subr.mxu0 %v209
    %1082 = vmatpush1.msra.mxu0 %v208
    %1083 = vmatprep.subr.mxu0 %v213
    %1084 = vmatpush1.msra.mxu0 %v212
    %1085 = vmatprep.subr.mxu0 %v217
    %1086 = vmatpush1.msra.mxu0 %v216
    %1087 = vmatprep.subr.mxu0 %v221
    %1088 = vmatpush1.msra.mxu0 %v220
    %1089 = vmatprep.subr.mxu0 %v225
    %1090 = vmatpush1.msra.mxu0 %v224
    %1091 = vmatprep.subr.mxu0 %v229
    %1092 = vmatpush1.msra.mxu0 %v228
    %1093 = vmatprep.subr.mxu0 %v233
    %1094 = vmatpush1.msra.mxu0 %v232
    %1095 = vmatprep.subr.mxu0 0.0
    %1096 = vmatpush1.msra.mxu0 0.0
    %1097 = vmatprep.subr.mxu0 0.0
    %1098 = vmatpush1.msra.mxu0 0.0
    %1099 = vmatprep.subr.mxu0 0.0
    %1100 = vmatpush1.msra.mxu0 0.0
    %1101 = vmatprep.subr.mxu0 0.0
    %1102 = vmatpush1.msra.mxu0 0.0
    %1103 = vmatprep.subr.mxu0 0.0
    %1104 = vmatpush1.msra.mxu0 0.0
    %1105 = vmatprep.subr.mxu0 0.0
    %1106 = vmatpush1.msra.mxu0 0.0
    %1107 = vmatprep.subr.mxu0 0.0
    %1108 = vmatpush1.msra.mxu0 0.0
    %1109 = vmatprep.subr.mxu0 0.0
    %1110 = vmatpush1.msra.mxu0 0.0
    %1111 = vmatprep.subr.mxu0 0.0
    %1112 = vmatpush1.msra.mxu0 0.0
    %1113 = vmatprep.subr.mxu0 0.0
    %1114 = vmatpush1.msra.mxu0 0.0
    %1115 = vmatprep.subr.mxu0 0.0
    %1116 = vmatpush1.msra.mxu0 0.0
    %1117 = vmatprep.subr.mxu0 0.0
    %1118 = vmatpush1.msra.mxu0 0.0
    %1119 = vmatprep.subr.mxu0 0.0
    %1120 = vmatpush1.msra.mxu0 0.0
    %1121 = vmatprep.subr.mxu0 0.0
    %1122 = vmatpush1.msra.mxu0 0.0
    %1123 = vmatprep.subr.mxu0 0.0
    %1124 = vmatpush1.msra.mxu0 0.0
    %1125 = vmatprep.subr.mxu0 0.0
    %1126 = vmatpush1.msra.mxu0 0.0
    %1127 = vmatprep.mubr.f32.mxu0 0.0
    %1128 = vmatmul.mubr.f32.gmra.mrb[0].mxu0 %v991
    %v1129 = vpop.f32.mrb[0].mxu0
    %v1130 = vadd.f32 0.0, %v1129
    %v1131 = vpop.f32.mrb[0].mxu0
    %v1132 = vadd.f32 0.0, %v1131
    %1133 = vdwg.mxu0
    %v1134 = vadd.f32 %v341, %v1059
    %v1135 = vadd.f32 %v343, %v1061
    %v1136 = vadd.f32 %v454, %v1130
    %v1137 = vadd.f32 %v456, %v1132
    %v1138 = vsub.f32 0.0, %v1134
    %v1139 = vmul.f32 %v1138, 1.442695
    %v1140 = vpow.pop %v1139
    %v1141 = vadd.f32 %v1140, 1.0
    %v1142 = vrcp.pop %v1141
    %v1143 = vmul.f32 1.0, %v1142
    %v1144 = vsub.f32 0.0, %v1135
    %v1145 = vmul.f32 %v1144, 1.442695
    %v1146 = vpow.pop %v1145
    %v1147 = vadd.f32 %v1146, 1.0
    %v1148 = vrcp.pop %v1147
    %v1149 = vmul.f32 1.0, %v1148
    %v1150 = vtanh.pop %v1136
    %v1151 = vsub.f32 0.0, %v1137
    %v1152 = vmul.f32 %v1151, 1.442695
    %v1153 = vpow.pop %v1152
    %v1154 = vadd.f32 %v1153, 1.0
    %v1155 = vrcp.pop %v1154
    %v1156 = vmul.f32 1.0, %v1155
    %v1157 = vmul.f32 %v1149, %v989
    %v1158 = vmul.f32 %v1143, %v1150
    %v1159 = vadd.f32 %v1157, %v1158
    %v1160 = vtanh.pop %v1159
    %v1161 = vmul.f32 %v1156, %v1160
    %1162 = vmatprep.subr.mxu0 %v171
    %1163 = vmatpush1.msra.mxu0 %v170
    %1164 = vmatprep.subr.mxu0 %v175
    %1165 = vmatpush1.msra.mxu0 %v174
    %1166 = vmatprep.subr.mxu0 %v179
    %1167 = vmatpush1.msra.mxu0 %v178
    %1168 = vmatprep.subr.mxu0 %v183
    %1169 = vmatpush1.msra.mxu0 %v182
    %1170 = vmatprep.subr.mxu0 %v187
    %1171 = vmatpush1.msra.mxu0 %v186
    %1172 = vmatprep.subr.mxu0 %v191
    %1173 = vmatpush1.msra.mxu0 %v190
    %1174 = vmatprep.subr.mxu0 %v195
    %1175 = vmatpush1.msra.mxu0 %v194
    %1176 = vmatprep.subr.mxu0 %v199
    %1177 = vmatpush1.msra.mxu0 %v198
    %1178 = vmatprep.subr.mxu0 %v203
    %1179 = vmatpush1.msra.mxu0 %v202
    %1180 = vmatprep.subr.mxu0 %v207
    %1181 = vmatpush1.msra.mxu0 %v206
    %1182 = vmatprep.subr.mxu0 %v211
    %1183 = vmatpush1.msra.mxu0 %v210
    %1184 = vmatprep.subr.mxu0 %v215
    %1185 = vmatpush1.msra.mxu0 %v214
    %1186 = vmatprep.subr.mxu0 %v219
    %1187 = vmatpush1.msra.mxu0 %v218
    %1188 = vmatprep.subr.mxu0 %v223
    %1189 = vmatpush1.msra.mxu0 %v222
    %1190 = vmatprep.subr.mxu0 %v227
    %1191 = vmatpush1.msra.mxu0 %v226
    %1192 = vmatprep.subr.mxu0 %v231
    %1193 = vmatpush1.msra.mxu0 %v230
    %1194 = vmatprep.subr.mxu0 0.0
    %1195 = vmatpush1.msra.mxu0 0.0
    %1196 = vmatprep.subr.mxu0 0.0
    %1197 = vmatpush1.msra.mxu0 0.0
    %1198 = vmatprep.subr.mxu0 0.0
    %1199 = vmatpush1.msra.mxu0 0.0
    %1200 = vmatprep.subr.mxu0 0.0
    %1201 = vmatpush1.msra.mxu0 0.0
    %1202 = vmatprep.subr.mxu0 0.0
    %1203 = vmatpush1.msra.mxu0 0.0
    %1204 = vmatprep.subr.mxu0 0.0
    %1205 = vmatpush1.msra.mxu0 0.0
    %1206 = vmatprep.subr.mxu0 0.0
    %1207 = vmatpush1.msra.mxu0 0.0
    %1208 = vmatprep.subr.mxu0 0.0
    %1209 = vmatpush1.msra.mxu0 0.0
    %1210 = vmatprep.subr.mxu0 0.0
    %1211 = vmatpush1.msra.mxu0 0.0
    %1212 = vmatprep.subr.mxu0 0.0
    %1213 = vmatpush1.msra.mxu0 0.0
    %1214 = vmatprep.subr.mxu0 0.0
    %1215 = vmatpush1.msra.mxu0 0.0
    %1216 = vmatprep.subr.mxu0 0.0
    %1217 = vmatpush1.msra.mxu0 0.0
    %1218 = vmatprep.subr.mxu0 0.0
    %1219 = vmatpush1.msra.mxu0 0.0
    %1220 = vmatprep.subr.mxu0 0.0
    %1221 = vmatpush1.msra.mxu0 0.0
    %1222 = vmatprep.subr.mxu0 0.0
    %1223 = vmatpush1.msra.mxu0 0.0
    %1224 = vmatprep.subr.mxu0 0.0
    %1225 = vmatpush1.msra.mxu0 0.0
    %1226 = vmatprep.mubr.f32.mxu0 0.0
    %1227 = vmatmul.mubr.f32.gmra.mrb[0].mxu0 %v1161
    %v1228 = vpop.f32.mrb[0].mxu0
    %v1229 = vadd.f32 0.0, %v1228
    %v1230 = vpop.f32.mrb[0].mxu0
    %v1231 = vadd.f32 0.0, %v1230
    %1232 = vdwg.mxu0
    %1233 = vmatprep.subr.mxu0 %v173
    %1234 = vmatpush1.msra.mxu0 %v172
    %1235 = vmatprep.subr.mxu0 %v177
    %1236 = vmatpush1.msra.mxu0 %v176
    %1237 = vmatprep.subr.mxu0 %v181
    %1238 = vmatpush1.msra.mxu0 %v180
    %1239 = vmatprep.subr.mxu0 %v185
    %1240 = vmatpush1.msra.mxu0 %v184
    %1241 = vmatprep.subr.mxu0 %v189
    %1242 = vmatpush1.msra.mxu0 %v188
    %1243 = vmatprep.subr.mxu0 %v193
    %1244 = vmatpush1.msra.mxu0 %v192
    %1245 = vmatprep.subr.mxu0 %v197
    %1246 = vmatpush1.msra.mxu0 %v196
    %1247 = vmatprep.subr.mxu0 %v201
    %1248 = vmatpush1.msra.mxu0 %v200
    %1249 = vmatprep.subr.mxu0 %v205
    %1250 = vmatpush1.msra.mxu0 %v204
    %1251 = vmatprep.subr.mxu0 %v209
    %1252 = vmatpush1.msra.mxu0 %v208
    %1253 = vmatprep.subr.mxu0 %v213
    %1254 = vmatpush1.msra.mxu0 %v212
    %1255 = vmatprep.subr.mxu0 %v217
    %1256 = vmatpush1.msra.mxu0 %v216
    %1257 = vmatprep.subr.mxu0 %v221
    %1258 = vmatpush1.msra.mxu0 %v220
    %1259 = vmatprep.subr.mxu0 %v225
    %1260 = vmatpush1.msra.mxu0 %v224
    %1261 = vmatprep.subr.mxu0 %v229
    %1262 = vmatpush1.msra.mxu0 %v228
    %1263 = vmatprep.subr.mxu0 %v233
    %1264 = vmatpush1.msra.mxu0 %v232
    %1265 = vmatprep.subr.mxu0 0.0
    %1266 = vmatpush1.msra.mxu0 0.0
    %1267 = vmatprep.subr.mxu0 0.0
    %1268 = vmatpush1.msra.mxu0 0.0
    %1269 = vmatprep.subr.mxu0 0.0
    %1270 = vmatpush1.msra.mxu0 0.0
    %1271 = vmatprep.subr.mxu0 0.0
    %1272 = vmatpush1.msra.mxu0 0.0
    %1273 = vmatprep.subr.mxu0 0.0
    %1274 = vmatpush1.msra.mxu0 0.0
    %1275 = vmatprep.subr.mxu0 0.0
    %1276 = vmatpush1.msra.mxu0 0.0
    %1277 = vmatprep.subr.mxu0 0.0
    %1278 = vmatpush1.msra.mxu0 0.0
    %1279 = vmatprep.subr.mxu0 0.0
    %1280 = vmatpush1.msra.mxu0 0.0
    %1281 = vmatprep.subr.mxu0 0.0
    %1282 = vmatpush1.msra.mxu0 0.0
    %1283 = vmatprep.subr.mxu0 0.0
    %1284 = vmatpush1.msra.mxu0 0.0
    %1285 = vmatprep.subr.mxu0 0.0
    %1286 = vmatpush1.msra.mxu0 0.0
    %1287 = vmatprep.subr.mxu0 0.0
    %1288 = vmatpush1.msra.mxu0 0.0
    %1289 = vmatprep.subr.mxu0 0.0
    %1290 = vmatpush1.msra.mxu0 0.0
    %1291 = vmatprep.subr.mxu0 0.0
    %1292 = vmatpush1.msra.mxu0 0.0
    %1293 = vmatprep.subr.mxu0 0.0
    %1294 = vmatpush1.msra.mxu0 0.0
    %1295 = vmatprep.subr.mxu0 0.0
    %1296 = vmatpush1.msra.mxu0 0.0
    %1297 = vmatprep.mubr.f32.mxu0 0.0
    %1298 = vmatmul.mubr.f32.gmra.mrb[0].mxu0 %v1161
    %v1299 = vpop.f32.mrb[0].mxu0
    %v1300 = vadd.f32 0.0, %v1299
    %v1301 = vpop.f32.mrb[0].mxu0
    %v1302 = vadd.f32 0.0, %v1301
    %1303 = vdwg.mxu0
    %v1304 = vadd.f32 %v347, %v1229
    %v1305 = vadd.f32 %v349, %v1231
    %v1306 = vadd.f32 %v460, %v1300
    %v1307 = vadd.f32 %v462, %v1302
    %v1308 = vsub.f32 0.0, %v1304
    %v1309 = vmul.f32 %v1308, 1.442695
    %v1310 = vpow.pop %v1309
    %v1311 = vadd.f32 %v1310, 1.0
    %v1312 = vrcp.pop %v1311
    %v1313 = vmul.f32 1.0, %v1312
    %v1314 = vsub.f32 0.0, %v1305
    %v1315 = vmul.f32 %v1314, 1.442695
    %v1316 = vpow.pop %v1315
    %v1317 = vadd.f32 %v1316, 1.0
    %v1318 = vrcp.pop %v1317
    %v1319 = vmul.f32 1.0, %v1318
    %v1320 = vtanh.pop %v1306
    %v1321 = vsub.f32 0.0, %v1307
    %v1322 = vmul.f32 %v1321, 1.442695
    %v1323 = vpow.pop %v1322
    %v1324 = vadd.f32 %v1323, 1.0
    %v1325 = vrcp.pop %v1324
    %v1326 = vmul.f32 1.0, %v1325
    %v1327 = vmul.f32 %v1319, %v1159
    %v1328 = vmul.f32 %v1313, %v1320
    %v1329 = vadd.f32 %v1327, %v1328
    %v1330 = vtanh.pop %v1329
    %v1331 = vmul.f32 %v1326, %v1330
    %1332 = vmatprep.subr.mxu0 %v171
    %1333 = vmatpush1.msra.mxu0 %v170
    %1334 = vmatprep.subr.mxu0 %v175
    %1335 = vmatpush1.msra.mxu0 %v174
    %1336 = vmatprep.subr.mxu0 %v179
    %1337 = vmatpush1.msra.mxu0 %v178
    %1338 = vmatprep.subr.mxu0 %v183
    %1339 = vmatpush1.msra.mxu0 %v182
    %1340 = vmatprep.subr.mxu0 %v187
    %1341 = vmatpush1.msra.mxu0 %v186
    %1342 = vmatprep.subr.mxu0 %v191
    %1343 = vmatpush1.msra.mxu0 %v190
    %1344 = vmatprep.subr.mxu0 %v195
    %1345 = vmatpush1.msra.mxu0 %v194
    %1346 = vmatprep.subr.mxu0 %v199
    %1347 = vmatpush1.msra.mxu0 %v198
    %1348 = vmatprep.subr.mxu0 %v203
    %1349 = vmatpush1.msra.mxu0 %v202
    %1350 = vmatprep.subr.mxu0 %v207
    %1351 = vmatpush1.msra.mxu0 %v206
    %1352 = vmatprep.subr.mxu0 %v211
    %1353 = vmatpush1.msra.mxu0 %v210
    %1354 = vmatprep.subr.mxu0 %v215
    %1355 = vmatpush1.msra.mxu0 %v214
    %1356 = vmatprep.subr.mxu0 %v219
    %1357 = vmatpush1.msra.mxu0 %v218
    %1358 = vmatprep.subr.mxu0 %v223
    %1359 = vmatpush1.msra.mxu0 %v222
    %1360 = vmatprep.subr.mxu0 %v227
    %1361 = vmatpush1.msra.mxu0 %v226
    %1362 = vmatprep.subr.mxu0 %v231
    %1363 = vmatpush1.msra.mxu0 %v230
    %1364 = vmatprep.subr.mxu0 0.0
    %1365 = vmatpush1.msra.mxu0 0.0
    %1366 = vmatprep.subr.mxu0 0.0
    %1367 = vmatpush1.msra.mxu0 0.0
    %1368 = vmatprep.subr.mxu0 0.0
    %1369 = vmatpush1.msra.mxu0 0.0
    %1370 = vmatprep.subr.mxu0 0.0
    %1371 = vmatpush1.msra.mxu0 0.0
    %1372 = vmatprep.subr.mxu0 0.0
    %1373 = vmatpush1.msra.mxu0 0.0
    %1374 = vmatprep.subr.mxu0 0.0
    %1375 = vmatpush1.msra.mxu0 0.0
    %1376 = vmatprep.subr.mxu0 0.0
    %1377 = vmatpush1.msra.mxu0 0.0
    %1378 = vmatprep.subr.mxu0 0.0
    %1379 = vmatpush1.msra.mxu0 0.0
    %1380 = vmatprep.subr.mxu0 0.0
    %1381 = vmatpush1.msra.mxu0 0.0
    %1382 = vmatprep.subr.mxu0 0.0
    %1383 = vmatpush1.msra.mxu0 0.0
    %1384 = vmatprep.subr.mxu0 0.0
    %1385 = vmatpush1.msra.mxu0 0.0
    %1386 = vmatprep.subr.mxu0 0.0
    %1387 = vmatpush1.msra.mxu0 0.0
    %1388 = vmatprep.subr.mxu0 0.0
    %1389 = vmatpush1.msra.mxu0 0.0
    %1390 = vmatprep.subr.mxu0 0.0
    %1391 = vmatpush1.msra.mxu0 0.0
    %1392 = vmatprep.subr.mxu0 0.0
    %1393 = vmatpush1.msra.mxu0 0.0
    %1394 = vmatprep.subr.mxu0 0.0
    %1395 = vmatpush1.msra.mxu0 0.0
    %1396 = vmatprep.mubr.f32.mxu0 0.0
    %1397 = vmatmul.mubr.f32.gmra.mrb[0].mxu0 %v1331
    %v1398 = vpop.f32.mrb[0].mxu0
    %v1399 = vadd.f32 0.0, %v1398
    %v1400 = vpop.f32.mrb[0].mxu0
    %v1401 = vadd.f32 0.0, %v1400
    %1402 = vdwg.mxu0
    %1403 = vmatprep.subr.mxu0 %v173
    %1404 = vmatpush1.msra.mxu0 %v172
    %1405 = vmatprep.subr.mxu0 %v177
    %1406 = vmatpush1.msra.mxu0 %v176
    %1407 = vmatprep.subr.mxu0 %v181
    %1408 = vmatpush1.msra.mxu0 %v180
    %1409 = vmatprep.subr.mxu0 %v185
    %1410 = vmatpush1.msra.mxu0 %v184
    %1411 = vmatprep.subr.mxu0 %v189
    %1412 = vmatpush1.msra.mxu0 %v188
    %1413 = vmatprep.subr.mxu0 %v193
    %1414 = vmatpush1.msra.mxu0 %v192
    %1415 = vmatprep.subr.mxu0 %v197
    %1416 = vmatpush1.msra.mxu0 %v196
    %1417 = vmatprep.subr.mxu0 %v201
    %1418 = vmatpush1.msra.mxu0 %v200
    %1419 = vmatprep.subr.mxu0 %v205
    %1420 = vmatpush1.msra.mxu0 %v204
    %1421 = vmatprep.subr.mxu0 %v209
    %1422 = vmatpush1.msra.mxu0 %v208
    %1423 = vmatprep.subr.mxu0 %v213
    %1424 = vmatpush1.msra.mxu0 %v212
    %1425 = vmatprep.subr.mxu0 %v217
    %1426 = vmatpush1.msra.mxu0 %v216
    %1427 = vmatprep.subr.mxu0 %v221
    %1428 = vmatpush1.msra.mxu0 %v220
    %1429 = vmatprep.subr.mxu0 %v225
    %1430 = vmatpush1.msra.mxu0 %v224
    %1431 = vmatprep.subr.mxu0 %v229
    %1432 = vmatpush1.msra.mxu0 %v228
    %1433 = vmatprep.subr.mxu0 %v233
    %1434 = vmatpush1.msra.mxu0 %v232
    %1435 = vmatprep.subr.mxu0 0.0
    %1436 = vmatpush1.msra.mxu0 0.0
    %1437 = vmatprep.subr.mxu0 0.0
    %1438 = vmatpush1.msra.mxu0 0.0
    %1439 = vmatprep.subr.mxu0 0.0
    %1440 = vmatpush1.msra.mxu0 0.0
    %1441 = vmatprep.subr.mxu0 0.0
    %1442 = vmatpush1.msra.mxu0 0.0
    %1443 = vmatprep.subr.mxu0 0.0
    %1444 = vmatpush1.msra.mxu0 0.0
    %1445 = vmatprep.subr.mxu0 0.0
    %1446 = vmatpush1.msra.mxu0 0.0
    %1447 = vmatprep.subr.mxu0 0.0
    %1448 = vmatpush1.msra.mxu0 0.0
    %1449 = vmatprep.subr.mxu0 0.0
    %1450 = vmatpush1.msra.mxu0 0.0
    %1451 = vmatprep.subr.mxu0 0.0
    %1452 = vmatpush1.msra.mxu0 0.0
    %1453 = vmatprep.subr.mxu0 0.0
    %1454 = vmatpush1.msra.mxu0 0.0
    %1455 = vmatprep.subr.mxu0 0.0
    %1456 = vmatpush1.msra.mxu0 0.0
    %1457 = vmatprep.subr.mxu0 0.0
    %1458 = vmatpush1.msra.mxu0 0.0
    %1459 = vmatprep.subr.mxu0 0.0
    %1460 = vmatpush1.msra.mxu0 0.0
    %1461 = vmatprep.subr.mxu0 0.0
    %1462 = vmatpush1.msra.mxu0 0.0
    %1463 = vmatprep.subr.mxu0 0.0
    %1464 = vmatpush1.msra.mxu0 0.0
    %1465 = vmatprep.subr.mxu0 0.0
    %1466 = vmatpush1.msra.mxu0 0.0
    %1467 = vmatprep.mubr.f32.mxu0 0.0
    %1468 = vmatmul.mubr.f32.gmra.mrb[0].mxu0 %v1331
    %v1469 = vpop.f32.mrb[0].mxu0
    %v1470 = vadd.f32 0.0, %v1469
    %v1471 = vpop.f32.mrb[0].mxu0
    %v1472 = vadd.f32 0.0, %v1471
    %1473 = vdwg.mxu0
    %v1474 = vadd.f32 %v353, %v1399
    %v1475 = vadd.f32 %v355, %v1401
    %v1476 = vadd.f32 %v466, %v1470
    %v1477 = vadd.f32 %v468, %v1472
    %v1478 = vsub.f32 0.0, %v1474
    %v1479 = vmul.f32 %v1478, 1.442695
    %v1480 = vpow.pop %v1479
    %v1481 = vadd.f32 %v1480, 1.0
    %v1482 = vrcp.pop %v1481
    %v1483 = vmul.f32 1.0, %v1482
    %v1484 = vsub.f32 0.0, %v1475
    %v1485 = vmul.f32 %v1484, 1.442695
    %v1486 = vpow.pop %v1485
    %v1487 = vadd.f32 %v1486, 1.0
    %v1488 = vrcp.pop %v1487
    %v1489 = vmul.f32 1.0, %v1488
    %v1490 = vtanh.pop %v1476
    %v1491 = vsub.f32 0.0, %v1477
    %v1492 = vmul.f32 %v1491, 1.442695
    %v1493 = vpow.pop %v1492
    %v1494 = vadd.f32 %v1493, 1.0
    %v1495 = vrcp.pop %v1494
    %v1496 = vmul.f32 1.0, %v1495
    %v1497 = vmul.f32 %v1489, %v1329
    %v1498 = vmul.f32 %v1483, %v1490
    %v1499 = vadd.f32 %v1497, %v1498
    %v1500 = vtanh.pop %v1499
    %v1501 = vmul.f32 %v1496, %v1500
    %1502 = vmatprep.subr.mxu0 %v171
    %1503 = vmatpush1.msra.mxu0 %v170
    %1504 = vmatprep.subr.mxu0 %v175
    %1505 = vmatpush1.msra.mxu0 %v174
    %1506 = vmatprep.subr.mxu0 %v179
    %1507 = vmatpush1.msra.mxu0 %v178
    %1508 = vmatprep.subr.mxu0 %v183
    %1509 = vmatpush1.msra.mxu0 %v182
    %1510 = vmatprep.subr.mxu0 %v187
    %1511 = vmatpush1.msra.mxu0 %v186
    %1512 = vmatprep.subr.mxu0 %v191
    %1513 = vmatpush1.msra.mxu0 %v190
    %1514 = vmatprep.subr.mxu0 %v195
    %1515 = vmatpush1.msra.mxu0 %v194
    %1516 = vmatprep.subr.mxu0 %v199
    %1517 = vmatpush1.msra.mxu0 %v198
    %1518 = vmatprep.subr.mxu0 %v203
    %1519 = vmatpush1.msra.mxu0 %v202
    %1520 = vmatprep.subr.mxu0 %v207
    %1521 = vmatpush1.msra.mxu0 %v206
    %1522 = vmatprep.subr.mxu0 %v211
    %1523 = vmatpush1.msra.mxu0 %v210
    %1524 = vmatprep.subr.mxu0 %v215
    %1525 = vmatpush1.msra.mxu0 %v214
    %1526 = vmatprep.subr.mxu0 %v219
    %1527 = vmatpush1.msra.mxu0 %v218
    %1528 = vmatprep.subr.mxu0 %v223
    %1529 = vmatpush1.msra.mxu0 %v222
    %1530 = vmatprep.subr.mxu0 %v227
    %1531 = vmatpush1.msra.mxu0 %v226
    %1532 = vmatprep.subr.mxu0 %v231
    %1533 = vmatpush1.msra.mxu0 %v230
    %1534 = vmatprep.subr.mxu0 0.0
    %1535 = vmatpush1.msra.mxu0 0.0
    %1536 = vmatprep.subr.mxu0 0.0
    %1537 = vmatpush1.msra.mxu0 0.0
    %1538 = vmatprep.subr.mxu0 0.0
    %1539 = vmatpush1.msra.mxu0 0.0
    %1540 = vmatprep.subr.mxu0 0.0
    %1541 = vmatpush1.msra.mxu0 0.0
    %1542 = vmatprep.subr.mxu0 0.0
    %1543 = vmatpush1.msra.mxu0 0.0
    %1544 = vmatprep.subr.mxu0 0.0
    %1545 = vmatpush1.msra.mxu0 0.0
    %1546 = vmatprep.subr.mxu0 0.0
    %1547 = vmatpush1.msra.mxu0 0.0
    %1548 = vmatprep.subr.mxu0 0.0
    %1549 = vmatpush1.msra.mxu0 0.0
    %1550 = vmatprep.subr.mxu0 0.0
    %1551 = vmatpush1.msra.mxu0 0.0
    %1552 = vmatprep.subr.mxu0 0.0
    %1553 = vmatpush1.msra.mxu0 0.0
    %1554 = vmatprep.subr.mxu0 0.0
    %1555 = vmatpush1.msra.mxu0 0.0
    %1556 = vmatprep.subr.mxu0 0.0
    %1557 = vmatpush1.msra.mxu0 0.0
    %1558 = vmatprep.subr.mxu0 0.0
    %1559 = vmatpush1.msra.mxu0 0.0
    %1560 = vmatprep.subr.mxu0 0.0
    %1561 = vmatpush1.msra.mxu0 0.0
    %1562 = vmatprep.subr.mxu0 0.0
    %1563 = vmatpush1.msra.mxu0 0.0
    %1564 = vmatprep.subr.mxu0 0.0
    %1565 = vmatpush1.msra.mxu0 0.0
    %1566 = vmatprep.mubr.f32.mxu0 0.0
    %1567 = vmatmul.mubr.f32.gmra.mrb[0].mxu0 %v1501
    %v1568 = vpop.f32.mrb[0].mxu0
    %v1569 = vadd.f32 0.0, %v1568
    %v1570 = vpop.f32.mrb[0].mxu0
    %v1571 = vadd.f32 0.0, %v1570
    %1572 = vdwg.mxu0
    %1573 = vmatprep.subr.mxu0 %v173
    %1574 = vmatpush1.msra.mxu0 %v172
    %1575 = vmatprep.subr.mxu0 %v177
    %1576 = vmatpush1.msra.mxu0 %v176
    %1577 = vmatprep.subr.mxu0 %v181
    %1578 = vmatpush1.msra.mxu0 %v180
    %1579 = vmatprep.subr.mxu0 %v185
    %1580 = vmatpush1.msra.mxu0 %v184
    %1581 = vmatprep.subr.mxu0 %v189
    %1582 = vmatpush1.msra.mxu0 %v188
    %1583 = vmatprep.subr.mxu0 %v193
    %1584 = vmatpush1.msra.mxu0 %v192
    %1585 = vmatprep.subr.mxu0 %v197
    %1586 = vmatpush1.msra.mxu0 %v196
    %1587 = vmatprep.subr.mxu0 %v201
    %1588 = vmatpush1.msra.mxu0 %v200
    %1589 = vmatprep.subr.mxu0 %v205
    %1590 = vmatpush1.msra.mxu0 %v204
    %1591 = vmatprep.subr.mxu0 %v209
    %1592 = vmatpush1.msra.mxu0 %v208
    %1593 = vmatprep.subr.mxu0 %v213
    %1594 = vmatpush1.msra.mxu0 %v212
    %1595 = vmatprep.subr.mxu0 %v217
    %1596 = vmatpush1.msra.mxu0 %v216
    %1597 = vmatprep.subr.mxu0 %v221
    %1598 = vmatpush1.msra.mxu0 %v220
    %1599 = vmatprep.subr.mxu0 %v225
    %1600 = vmatpush1.msra.mxu0 %v224
    %1601 = vmatprep.subr.mxu0 %v229
    %1602 = vmatpush1.msra.mxu0 %v228
    %1603 = vmatprep.subr.mxu0 %v233
    %1604 = vmatpush1.msra.mxu0 %v232
    %1605 = vmatprep.subr.mxu0 0.0
    %1606 = vmatpush1.msra.mxu0 0.0
    %1607 = vmatprep.subr.mxu0 0.0
    %1608 = vmatpush1.msra.mxu0 0.0
    %1609 = vmatprep.subr.mxu0 0.0
    %1610 = vmatpush1.msra.mxu0 0.0
    %1611 = vmatprep.subr.mxu0 0.0
    %1612 = vmatpush1.msra.mxu0 0.0
    %1613 = vmatprep.subr.mxu0 0.0
    %1614 = vmatpush1.msra.mxu0 0.0
    %1615 = vmatprep.subr.mxu0 0.0
    %1616 = vmatpush1.msra.mxu0 0.0
    %1617 = vmatprep.subr.mxu0 0.0
    %1618 = vmatpush1.msra.mxu0 0.0
    %1619 = vmatprep.subr.mxu0 0.0
    %1620 = vmatpush1.msra.mxu0 0.0
    %1621 = vmatprep.subr.mxu0 0.0
    %1622 = vmatpush1.msra.mxu0 0.0
    %1623 = vmatprep.subr.mxu0 0.0
    %1624 = vmatpush1.msra.mxu0 0.0
    %1625 = vmatprep.subr.mxu0 0.0
    %1626 = vmatpush1.msra.mxu0 0.0
    %1627 = vmatprep.subr.mxu0 0.0
    %1628 = vmatpush1.msra.mxu0 0.0
    %1629 = vmatprep.subr.mxu0 0.0
    %1630 = vmatpush1.msra.mxu0 0.0
    %1631 = vmatprep.subr.mxu0 0.0
    %1632 = vmatpush1.msra.mxu0 0.0
    %1633 = vmatprep.subr.mxu0 0.0
    %1634 = vmatpush1.msra.mxu0 0.0
    %1635 = vmatprep.subr.mxu0 0.0
    %1636 = vmatpush1.msra.mxu0 0.0
    %1637 = vmatprep.mubr.f32.mxu0 0.0
    %1638 = vmatmul.mubr.f32.gmra.mrb[0].mxu0 %v1501
    %v1639 = vpop.f32.mrb[0].mxu0
    %v1640 = vadd.f32 0.0, %v1639
    %v1641 = vpop.f32.mrb[0].mxu0
    %v1642 = vadd.f32 0.0, %v1641
    %1643 = vdwg.mxu0
    %v1644 = vadd.f32 %v359, %v1569
    %v1645 = vadd.f32 %v361, %v1571
    %v1646 = vadd.f32 %v472, %v1640
    %v1647 = vadd.f32 %v474, %v1642
    %v1648 = vsub.f32 0.0, %v1644
    %v1649 = vmul.f32 %v1648, 1.442695
    %v1650 = vpow.pop %v1649
    %v1651 = vadd.f32 %v1650, 1.0
    %v1652 = vrcp.pop %v1651
    %v1653 = vmul.f32 1.0, %v1652
    %v1654 = vsub.f32 0.0, %v1645
    %v1655 = vmul.f32 %v1654, 1.442695
    %v1656 = vpow.pop %v1655
    %v1657 = vadd.f32 %v1656, 1.0
    %v1658 = vrcp.pop %v1657
    %v1659 = vmul.f32 1.0, %v1658
    %v1660 = vtanh.pop %v1646
    %v1661 = vsub.f32 0.0, %v1647
    %v1662 = vmul.f32 %v1661, 1.442695
    %v1663 = vpow.pop %v1662
    %v1664 = vadd.f32 %v1663, 1.0
    %v1665 = vrcp.pop %v1664
    %v1666 = vmul.f32 1.0, %v1665
    %v1667 = vmul.f32 %v1659, %v1499
    %v1668 = vmul.f32 %v1653, %v1660
    %v1669 = vadd.f32 %v1667, %v1668
    %v1670 = vtanh.pop %v1669
    %v1671 = vmul.f32 %v1666, %v1670
    %1672 = vmatprep.subr.mxu0 %v171
    %1673 = vmatpush1.msra.mxu0 %v170
    %1674 = vmatprep.subr.mxu0 %v175
    %1675 = vmatpush1.msra.mxu0 %v174
    %1676 = vmatprep.subr.mxu0 %v179
    %1677 = vmatpush1.msra.mxu0 %v178
    %1678 = vmatprep.subr.mxu0 %v183
    %1679 = vmatpush1.msra.mxu0 %v182
    %1680 = vmatprep.subr.mxu0 %v187
    %1681 = vmatpush1.msra.mxu0 %v186
    %1682 = vmatprep.subr.mxu0 %v191
    %1683 = vmatpush1.msra.mxu0 %v190
    %1684 = vmatprep.subr.mxu0 %v195
    %1685 = vmatpush1.msra.mxu0 %v194
    %1686 = vmatprep.subr.mxu0 %v199
    %1687 = vmatpush1.msra.mxu0 %v198
    %1688 = vmatprep.subr.mxu0 %v203
    %1689 = vmatpush1.msra.mxu0 %v202
    %1690 = vmatprep.subr.mxu0 %v207
    %1691 = vmatpush1.msra.mxu0 %v206
    %1692 = vmatprep.subr.mxu0 %v211
    %1693 = vmatpush1.msra.mxu0 %v210
    %1694 = vmatprep.subr.mxu0 %v215
    %1695 = vmatpush1.msra.mxu0 %v214
    %1696 = vmatprep.subr.mxu0 %v219
    %1697 = vmatpush1.msra.mxu0 %v218
    %1698 = vmatprep.subr.mxu0 %v223
    %1699 = vmatpush1.msra.mxu0 %v222
    %1700 = vmatprep.subr.mxu0 %v227
    %1701 = vmatpush1.msra.mxu0 %v226
    %1702 = vmatprep.subr.mxu0 %v231
    %1703 = vmatpush1.msra.mxu0 %v230
    %1704 = vmatprep.subr.mxu0 0.0
    %1705 = vmatpush1.msra.mxu0 0.0
    %1706 = vmatprep.subr.mxu0 0.0
    %1707 = vmatpush1.msra.mxu0 0.0
    %1708 = vmatprep.subr.mxu0 0.0
    %1709 = vmatpush1.msra.mxu0 0.0
    %1710 = vmatprep.subr.mxu0 0.0
    %1711 = vmatpush1.msra.mxu0 0.0
    %1712 = vmatprep.subr.mxu0 0.0
    %1713 = vmatpush1.msra.mxu0 0.0
    %1714 = vmatprep.subr.mxu0 0.0
    %1715 = vmatpush1.msra.mxu0 0.0
    %1716 = vmatprep.subr.mxu0 0.0
    %1717 = vmatpush1.msra.mxu0 0.0
    %1718 = vmatprep.subr.mxu0 0.0
    %1719 = vmatpush1.msra.mxu0 0.0
    %1720 = vmatprep.subr.mxu0 0.0
    %1721 = vmatpush1.msra.mxu0 0.0
    %1722 = vmatprep.subr.mxu0 0.0
    %1723 = vmatpush1.msra.mxu0 0.0
    %1724 = vmatprep.subr.mxu0 0.0
    %1725 = vmatpush1.msra.mxu0 0.0
    %1726 = vmatprep.subr.mxu0 0.0
    %1727 = vmatpush1.msra.mxu0 0.0
    %1728 = vmatprep.subr.mxu0 0.0
    %1729 = vmatpush1.msra.mxu0 0.0
    %1730 = vmatprep.subr.mxu0 0.0
    %1731 = vmatpush1.msra.mxu0 0.0
    %1732 = vmatprep.subr.mxu0 0.0
    %1733 = vmatpush1.msra.mxu0 0.0
    %1734 = vmatprep.subr.mxu0 0.0
    %1735 = vmatpush1.msra.mxu0 0.0
    %1736 = vmatprep.mubr.f32.mxu0 0.0
    %1737 = vmatmul.mubr.f32.gmra.mrb[0].mxu0 %v1671
    %v1738 = vpop.f32.mrb[0].mxu0
    %v1739 = vadd.f32 0.0, %v1738
    %v1740 = vpop.f32.mrb[0].mxu0
    %v1741 = vadd.f32 0.0, %v1740
    %1742 = vdwg.mxu0
    %1743 = vmatprep.subr.mxu0 %v173
    %1744 = vmatpush1.msra.mxu0 %v172
    %1745 = vmatprep.subr.mxu0 %v177
    %1746 = vmatpush1.msra.mxu0 %v176
    %1747 = vmatprep.subr.mxu0 %v181
    %1748 = vmatpush1.msra.mxu0 %v180
    %1749 = vmatprep.subr.mxu0 %v185
    %1750 = vmatpush1.msra.mxu0 %v184
    %1751 = vmatprep.subr.mxu0 %v189
    %1752 = vmatpush1.msra.mxu0 %v188
    %1753 = vmatprep.subr.mxu0 %v193
    %1754 = vmatpush1.msra.mxu0 %v192
    %1755 = vmatprep.subr.mxu0 %v197
    %1756 = vmatpush1.msra.mxu0 %v196
    %1757 = vmatprep.subr.mxu0 %v201
    %1758 = vmatpush1.msra.mxu0 %v200
    %1759 = vmatprep.subr.mxu0 %v205
    %1760 = vmatpush1.msra.mxu0 %v204
    %1761 = vmatprep.subr.mxu0 %v209
    %1762 = vmatpush1.msra.mxu0 %v208
    %1763 = vmatprep.subr.mxu0 %v213
    %1764 = vmatpush1.msra.mxu0 %v212
    %1765 = vmatprep.subr.mxu0 %v217
    %1766 = vmatpush1.msra.mxu0 %v216
    %1767 = vmatprep.subr.mxu0 %v221
    %1768 = vmatpush1.msra.mxu0 %v220
    %1769 = vmatprep.subr.mxu0 %v225
    %1770 = vmatpush1.msra.mxu0 %v224
    %1771 = vmatprep.subr.mxu0 %v229
    %1772 = vmatpush1.msra.mxu0 %v228
    %1773 = vmatprep.subr.mxu0 %v233
    %1774 = vmatpush1.msra.mxu0 %v232
    %1775 = vmatprep.subr.mxu0 0.0
    %1776 = vmatpush1.msra.mxu0 0.0
    %1777 = vmatprep.subr.mxu0 0.0
    %1778 = vmatpush1.msra.mxu0 0.0
    %1779 = vmatprep.subr.mxu0 0.0
    %1780 = vmatpush1.msra.mxu0 0.0
    %1781 = vmatprep.subr.mxu0 0.0
    %1782 = vmatpush1.msra.mxu0 0.0
    %1783 = vmatprep.subr.mxu0 0.0
    %1784 = vmatpush1.msra.mxu0 0.0
    %1785 = vmatprep.subr.mxu0 0.0
    %1786 = vmatpush1.msra.mxu0 0.0
    %1787 = vmatprep.subr.mxu0 0.0
    %1788 = vmatpush1.msra.mxu0 0.0
    %1789 = vmatprep.subr.mxu0 0.0
    %1790 = vmatpush1.msra.mxu0 0.0
    %1791 = vmatprep.subr.mxu0 0.0
    %1792 = vmatpush1.msra.mxu0 0.0
    %1793 = vmatprep.subr.mxu0 0.0
    %1794 = vmatpush1.msra.mxu0 0.0
    %1795 = vmatprep.subr.mxu0 0.0
    %1796 = vmatpush1.msra.mxu0 0.0
    %1797 = vmatprep.subr.mxu0 0.0
    %1798 = vmatpush1.msra.mxu0 0.0
    %1799 = vmatprep.subr.mxu0 0.0
    %1800 = vmatpush1.msra.mxu0 0.0
    %1801 = vmatprep.subr.mxu0 0.0
    %1802 = vmatpush1.msra.mxu0 0.0
    %1803 = vmatprep.subr.mxu0 0.0
    %1804 = vmatpush1.msra.mxu0 0.0
    %1805 = vmatprep.subr.mxu0 0.0
    %1806 = vmatpush1.msra.mxu0 0.0
    %1807 = vmatprep.mubr.f32.mxu0 0.0
    %1808 = vmatmul.mubr.f32.gmra.mrb[0].mxu0 %v1671
    %v1809 = vpop.f32.mrb[0].mxu0
    %v1810 = vadd.f32 0.0, %v1809
    %v1811 = vpop.f32.mrb[0].mxu0
    %v1812 = vadd.f32 0.0, %v1811
    %1813 = vdwg.mxu0
    %v1814 = vadd.f32 %v365, %v1739
    %v1815 = vadd.f32 %v367, %v1741
    %v1816 = vadd.f32 %v478, %v1810
    %v1817 = vadd.f32 %v480, %v1812
    %v1818 = vsub.f32 0.0, %v1814
    %v1819 = vmul.f32 %v1818, 1.442695
    %v1820 = vpow.pop %v1819
    %v1821 = vadd.f32 %v1820, 1.0
    %v1822 = vrcp.pop %v1821
    %v1823 = vmul.f32 1.0, %v1822
    %v1824 = vsub.f32 0.0, %v1815
    %v1825 = vmul.f32 %v1824, 1.442695
    %v1826 = vpow.pop %v1825
    %v1827 = vadd.f32 %v1826, 1.0
    %v1828 = vrcp.pop %v1827
    %v1829 = vmul.f32 1.0, %v1828
    %v1830 = vtanh.pop %v1816
    %v1831 = vsub.f32 0.0, %v1817
    %v1832 = vmul.f32 %v1831, 1.442695
    %v1833 = vpow.pop %v1832
    %v1834 = vadd.f32 %v1833, 1.0
    %v1835 = vrcp.pop %v1834
    %v1836 = vmul.f32 1.0, %v1835
    %v1837 = vmul.f32 %v1829, %v1669
    %v1838 = vmul.f32 %v1823, %v1830
    %v1839 = vadd.f32 %v1837, %v1838
    %v1840 = vtanh.pop %v1839
    %v1841 = vmul.f32 %v1836, %v1840
    %v1842 = vld [vmem:[#allocation8] sm:$0xff]
    %v1843 = vld [vmem:[#allocation8 + $0x8] sm:$0xff]
    %v1844 = vld [vmem:[#allocation8 + $0x10] sm:$0xff]
    %v1845 = vld [vmem:[#allocation8 + $0x18] sm:$0xff]
    %v1846 = vld [vmem:[#allocation8 + $0x20] sm:$0xff]
    %v1847 = vld [vmem:[#allocation8 + $0x28] sm:$0xff]
    %v1848 = vld [vmem:[#allocation8 + $0x30] sm:$0xff]
    %v1849 = vld [vmem:[#allocation8 + $0x38] sm:$0xff]
    %v1850 = vld [vmem:[#allocation8 + $0x40] sm:$0xff]
    %v1851 = vld [vmem:[#allocation8 + $0x48] sm:$0xff]
    %v1852 = vld [vmem:[#allocation8 + $0x50] sm:$0xff]
    %v1853 = vld [vmem:[#allocation8 + $0x58] sm:$0xff]
    %v1854 = vld [vmem:[#allocation8 + $0x60] sm:$0xff]
    %v1855 = vld [vmem:[#allocation8 + $0x68] sm:$0xff]
    %v1856 = vld [vmem:[#allocation8 + $0x70] sm:$0xff]
    %v1857 = vld [vmem:[#allocation8 + $0x78] sm:$0xff]
    %v1858 = vld [vmem:[%s5] sm:$0x1]
    %v1860 = vlaneseq
    %v1861 = vshrl.u32 %v1860, 7
    %v1862 = vsub.s32 0, %v1861
    %v1863 = vrot.slane %v1858, %v1862
    %1865 = vmatprep.subr.mxu0 0.0
    %1866 = vmatpush1.msra.mxu0 %v1842
    %1867 = vmatprep.subr.mxu0 0.0
    %1868 = vmatpush1.msra.mxu0 %v1843
    %1869 = vmatprep.subr.mxu0 0.0
    %1870 = vmatpush1.msra.mxu0 %v1844
    %1871 = vmatprep.subr.mxu0 0.0
    %1872 = vmatpush1.msra.mxu0 %v1845
    %1873 = vmatprep.subr.mxu0 0.0
    %1874 = vmatpush1.msra.mxu0 %v1846
    %1875 = vmatprep.subr.mxu0 0.0
    %1876 = vmatpush1.msra.mxu0 %v1847
    %1877 = vmatprep.subr.mxu0 0.0
    %1878 = vmatpush1.msra.mxu0 %v1848
    %1879 = vmatprep.subr.mxu0 0.0
    %1880 = vmatpush1.msra.mxu0 %v1849
    %1881 = vmatprep.subr.mxu0 0.0
    %1882 = vmatpush1.msra.mxu0 %v1850
    %1883 = vmatprep.subr.mxu0 0.0
    %1884 = vmatpush1.msra.mxu0 %v1851
    %1885 = vmatprep.subr.mxu0 0.0
    %1886 = vmatpush1.msra.mxu0 %v1852
    %1887 = vmatprep.subr.mxu0 0.0
    %1888 = vmatpush1.msra.mxu0 %v1853
    %1889 = vmatprep.subr.mxu0 0.0
    %1890 = vmatpush1.msra.mxu0 %v1854
    %1891 = vmatprep.subr.mxu0 0.0
    %1892 = vmatpush1.msra.mxu0 %v1855
    %1893 = vmatprep.subr.mxu0 0.0
    %1894 = vmatpush1.msra.mxu0 %v1856
    %1895 = vmatprep.subr.mxu0 0.0
    %1896 = vmatpush1.msra.mxu0 %v1857
    %1897 = vmatprep.subr.mxu0 0.0
    %1898 = vmatpush1.msra.mxu0 0.0
    %1899 = vmatprep.subr.mxu0 0.0
    %1900 = vmatpush1.msra.mxu0 0.0
    %1901 = vmatprep.subr.mxu0 0.0
    %1902 = vmatpush1.msra.mxu0 0.0
    %1903 = vmatprep.subr.mxu0 0.0
    %1904 = vmatpush1.msra.mxu0 0.0
    %1905 = vmatprep.subr.mxu0 0.0
    %1906 = vmatpush1.msra.mxu0 0.0
    %1907 = vmatprep.subr.mxu0 0.0
    %1908 = vmatpush1.msra.mxu0 0.0
    %1909 = vmatprep.subr.mxu0 0.0
    %1910 = vmatpush1.msra.mxu0 0.0
    %1911 = vmatprep.subr.mxu0 0.0
    %1912 = vmatpush1.msra.mxu0 0.0
    %1913 = vmatprep.subr.mxu0 0.0
    %1914 = vmatpush1.msra.mxu0 0.0
    %1915 = vmatprep.subr.mxu0 0.0
    %1916 = vmatpush1.msra.mxu0 0.0
    %1917 = vmatprep.subr.mxu0 0.0
    %1918 = vmatpush1.msra.mxu0 0.0
    %1919 = vmatprep.subr.mxu0 0.0
    %1920 = vmatpush1.msra.mxu0 0.0
    %1921 = vmatprep.subr.mxu0 0.0
    %1922 = vmatpush1.msra.mxu0 0.0
    %1923 = vmatprep.subr.mxu0 0.0
    %1924 = vmatpush1.msra.mxu0 0.0
    %1925 = vmatprep.subr.mxu0 0.0
    %1926 = vmatpush1.msra.mxu0 0.0
    %1927 = vmatprep.subr.mxu0 0.0
    %1928 = vmatpush1.msra.mxu0 0.0
    %1929 = vmatprep.mubr.f32.mxu0 0.0
    %1930 = vmatmul.mubr.f32.gmra.mrb[0].mxu0 %v1841
    %v1931 = vpop.f32.mrb[0].mxu0
    %v1932 = vadd.f32 %v1863, %v1931
    %v1933 = vpop.f32.mrb[0].mxu0
    %1934 = vdwg.mxu0
    %v1935 = vmax.f32 %v1932, 0.0
    %s1936 = scalar_lea.vmem [#allocation8], 128
    %v1937 = vld [vmem:[%s1936] sm:$0xff]
    %v1938 = vld [vmem:[%s1936 + $0x8] sm:$0xff]
    %v1939 = vld [vmem:[%s1936 + $0x10] sm:$0xff]
    %v1940 = vld [vmem:[%s1936 + $0x18] sm:$0xff]
    %v1941 = vld [vmem:[%s1936 + $0x20] sm:$0xff]
    %v1942 = vld [vmem:[%s1936 + $0x28] sm:$0xff]
    %v1943 = vld [vmem:[%s1936 + $0x30] sm:$0xff]
    %v1944 = vld [vmem:[%s1936 + $0x38] sm:$0xff]
    %v1945 = vld [vmem:[%s1936 + $0x40] sm:$0xff]
    %v1946 = vld [vmem:[%s1936 + $0x48] sm:$0xff]
    %v1947 = vld [vmem:[%s1936 + $0x50] sm:$0xff]
    %v1948 = vld [vmem:[%s1936 + $0x58] sm:$0xff]
    %v1949 = vld [vmem:[%s1936 + $0x60] sm:$0xff]
    %v1950 = vld [vmem:[%s1936 + $0x68] sm:$0xff]
    %v1951 = vld [vmem:[%s1936 + $0x70] sm:$0xff]
    %v1952 = vld [vmem:[%s1936 + $0x78] sm:$0xff]
    %s1953 = scalar_lea.vmem %s5, 1
    %v1954 = vld [vmem:[%s1953] sm:$0x1]
    %v1956 = vlaneseq
    %v1957 = vshrl.u32 %v1956, 7
    %v1958 = vsub.s32 0, %v1957
    %v1959 = vrot.slane %v1954, %v1958
    %1961 = vmatprep.subr.mxu0 0.0
    %1962 = vmatpush1.msra.mxu0 %v1937
    %1963 = vmatprep.subr.mxu0 0.0
    %1964 = vmatpush1.msra.mxu0 %v1938
    %1965 = vmatprep.subr.mxu0 0.0
    %1966 = vmatpush1.msra.mxu0 %v1939
    %1967 = vmatprep.subr.mxu0 0.0
    %1968 = vmatpush1.msra.mxu0 %v1940
    %1969 = vmatprep.subr.mxu0 0.0
    %1970 = vmatpush1.msra.mxu0 %v1941
    %1971 = vmatprep.subr.mxu0 0.0
    %1972 = vmatpush1.msra.mxu0 %v1942
    %1973 = vmatprep.subr.mxu0 0.0
    %1974 = vmatpush1.msra.mxu0 %v1943
    %1975 = vmatprep.subr.mxu0 0.0
    %1976 = vmatpush1.msra.mxu0 %v1944
    %1977 = vmatprep.subr.mxu0 0.0
    %1978 = vmatpush1.msra.mxu0 %v1945
    %1979 = vmatprep.subr.mxu0 0.0
    %1980 = vmatpush1.msra.mxu0 %v1946
    %1981 = vmatprep.subr.mxu0 0.0
    %1982 = vmatpush1.msra.mxu0 %v1947
    %1983 = vmatprep.subr.mxu0 0.0
    %1984 = vmatpush1.msra.mxu0 %v1948
    %1985 = vmatprep.subr.mxu0 0.0
    %1986 = vmatpush1.msra.mxu0 %v1949
    %1987 = vmatprep.subr.mxu0 0.0
    %1988 = vmatpush1.msra.mxu0 %v1950
    %1989 = vmatprep.subr.mxu0 0.0
    %1990 = vmatpush1.msra.mxu0 %v1951
    %1991 = vmatprep.subr.mxu0 0.0
    %1992 = vmatpush1.msra.mxu0 %v1952
    %1993 = vmatprep.subr.mxu0 0.0
    %1994 = vmatpush1.msra.mxu0 0.0
    %1995 = vmatprep.subr.mxu0 0.0
    %1996 = vmatpush1.msra.mxu0 0.0
    %1997 = vmatprep.subr.mxu0 0.0
    %1998 = vmatpush1.msra.mxu0 0.0
    %1999 = vmatprep.subr.mxu0 0.0
    %2000 = vmatpush1.msra.mxu0 0.0
    %2001 = vmatprep.subr.mxu0 0.0
    %2002 = vmatpush1.msra.mxu0 0.0
    %2003 = vmatprep.subr.mxu0 0.0
    %2004 = vmatpush1.msra.mxu0 0.0
    %2005 = vmatprep.subr.mxu0 0.0
    %2006 = vmatpush1.msra.mxu0 0.0
    %2007 = vmatprep.subr.mxu0 0.0
    %2008 = vmatpush1.msra.mxu0 0.0
    %2009 = vmatprep.subr.mxu0 0.0
    %2010 = vmatpush1.msra.mxu0 0.0
    %2011 = vmatprep.subr.mxu0 0.0
    %2012 = vmatpush1.msra.mxu0 0.0
    %2013 = vmatprep.subr.mxu0 0.0
    %2014 = vmatpush1.msra.mxu0 0.0
    %2015 = vmatprep.subr.mxu0 0.0
    %2016 = vmatpush1.msra.mxu0 0.0
    %2017 = vmatprep.subr.mxu0 0.0
    %2018 = vmatpush1.msra.mxu0 0.0
    %2019 = vmatprep.subr.mxu0 0.0
    %2020 = vmatpush1.msra.mxu0 0.0
    %2021 = vmatprep.subr.mxu0 0.0
    %2022 = vmatpush1.msra.mxu0 0.0
    %2023 = vmatprep.subr.mxu0 0.0
    %2024 = vmatpush1.msra.mxu0 0.0
    %2025 = vmatprep.mubr.f32.mxu0 0.0
    %2026 = vmatmul.mubr.f32.gmra.mrb[0].mxu0 %v1935
    %v2027 = vpop.f32.mrb[0].mxu0
    %v2028 = vadd.f32 %v1959, %v2027
    %v2029 = vpop.f32.mrb[0].mxu0
    %2030 = vdwg.mxu0
    %v2031 = vmax.f32 %v2028, 0.0
    %v2032 = vld [vmem:[#allocation10] sm:$0xff]
    %v2033 = vld [vmem:[#allocation10 + $0x8] sm:$0xff]
    %v2034 = vld [vmem:[#allocation10 + $0x10] sm:$0xff]
    %v2035 = vld [vmem:[#allocation10 + $0x18] sm:$0xff]
    %v2036 = vld [vmem:[#allocation10 + $0x20] sm:$0xff]
    %v2037 = vld [vmem:[#allocation10 + $0x28] sm:$0xff]
    %v2038 = vld [vmem:[#allocation10 + $0x30] sm:$0xff]
    %v2039 = vld [vmem:[#allocation10 + $0x38] sm:$0xff]
    %v2040 = vld [vmem:[#allocation10 + $0x40] sm:$0xff]
    %v2041 = vld [vmem:[#allocation10 + $0x48] sm:$0xff]
    %v2042 = vld [vmem:[#allocation10 + $0x50] sm:$0xff]
    %v2043 = vld [vmem:[#allocation10 + $0x58] sm:$0xff]
    %v2044 = vld [vmem:[#allocation10 + $0x60] sm:$0xff]
    %v2045 = vld [vmem:[#allocation10 + $0x68] sm:$0xff]
    %v2046 = vld [vmem:[#allocation10 + $0x70] sm:$0xff]
    %v2047 = vld [vmem:[#allocation10 + $0x78] sm:$0xff]
    %v2048 = vld [vmem:[%s7] sm:$0x1]
    %v2050 = vlaneseq
    %v2051 = vshrl.u32 %v2050, 7
    %v2052 = vsub.s32 0, %v2051
    %v2053 = vrot.slane %v2048, %v2052
    %2055 = vmatprep.subr.mxu0 0.0
    %2056 = vmatpush1.msra.mxu0 %v2032
    %2057 = vmatprep.subr.mxu0 0.0
    %2058 = vmatpush1.msra.mxu0 %v2033
    %2059 = vmatprep.subr.mxu0 0.0
    %2060 = vmatpush1.msra.mxu0 %v2034
    %2061 = vmatprep.subr.mxu0 0.0
    %2062 = vmatpush1.msra.mxu0 %v2035
    %2063 = vmatprep.subr.mxu0 0.0
    %2064 = vmatpush1.msra.mxu0 %v2036
    %2065 = vmatprep.subr.mxu0 0.0
    %2066 = vmatpush1.msra.mxu0 %v2037
    %2067 = vmatprep.subr.mxu0 0.0
    %2068 = vmatpush1.msra.mxu0 %v2038
    %2069 = vmatprep.subr.mxu0 0.0
    %2070 = vmatpush1.msra.mxu0 %v2039
    %2071 = vmatprep.subr.mxu0 0.0
    %2072 = vmatpush1.msra.mxu0 %v2040
    %2073 = vmatprep.subr.mxu0 0.0
    %2074 = vmatpush1.msra.mxu0 %v2041
    %2075 = vmatprep.subr.mxu0 0.0
    %2076 = vmatpush1.msra.mxu0 %v2042
    %2077 = vmatprep.subr.mxu0 0.0
    %2078 = vmatpush1.msra.mxu0 %v2043
    %2079 = vmatprep.subr.mxu0 0.0
    %2080 = vmatpush1.msra.mxu0 %v2044
    %2081 = vmatprep.subr.mxu0 0.0
    %2082 = vmatpush1.msra.mxu0 %v2045
    %2083 = vmatprep.subr.mxu0 0.0
    %2084 = vmatpush1.msra.mxu0 %v2046
    %2085 = vmatprep.subr.mxu0 0.0
    %2086 = vmatpush1.msra.mxu0 %v2047
    %2087 = vmatprep.subr.mxu0 0.0
    %2088 = vmatpush1.msra.mxu0 0.0
    %2089 = vmatprep.subr.mxu0 0.0
    %2090 = vmatpush1.msra.mxu0 0.0
    %2091 = vmatprep.subr.mxu0 0.0
    %2092 = vmatpush1.msra.mxu0 0.0
    %2093 = vmatprep.subr.mxu0 0.0
    %2094 = vmatpush1.msra.mxu0 0.0
    %2095 = vmatprep.subr.mxu0 0.0
    %2096 = vmatpush1.msra.mxu0 0.0
    %2097 = vmatprep.subr.mxu0 0.0
    %2098 = vmatpush1.msra.mxu0 0.0
    %2099 = vmatprep.subr.mxu0 0.0
    %2100 = vmatpush1.msra.mxu0 0.0
    %2101 = vmatprep.subr.mxu0 0.0
    %2102 = vmatpush1.msra.mxu0 0.0
    %2103 = vmatprep.subr.mxu0 0.0
    %2104 = vmatpush1.msra.mxu0 0.0
    %2105 = vmatprep.subr.mxu0 0.0
    %2106 = vmatpush1.msra.mxu0 0.0
    %2107 = vmatprep.subr.mxu0 0.0
    %2108 = vmatpush1.msra.mxu0 0.0
    %2109 = vmatprep.subr.mxu0 0.0
    %2110 = vmatpush1.msra.mxu0 0.0
    %2111 = vmatprep.subr.mxu0 0.0
    %2112 = vmatpush1.msra.mxu0 0.0
    %2113 = vmatprep.subr.mxu0 0.0
    %2114 = vmatpush1.msra.mxu0 0.0
    %2115 = vmatprep.subr.mxu0 0.0
    %2116 = vmatpush1.msra.mxu0 0.0
    %2117 = vmatprep.subr.mxu0 0.0
    %2118 = vmatpush1.msra.mxu0 0.0
    %2119 = vmatprep.mubr.f32.mxu0 0.0
    %2120 = vmatmul.mubr.f32.gmra.mrb[0].mxu0 %v2031
    %v2121 = vpop.f32.mrb[0].mxu0
    %v2122 = vadd.f32 %v2053, %v2121
    %v2123 = vpop.f32.mrb[0].mxu0
    %2124 = vdwg.mxu0
    %2125 = vst [vmem:[#allocation11] sm:$0xff] %v2122
    // Predicated region
    $region54: #{tpu_custom_call.1} parent=1 // pred_check
      _
    $region55: #{tpu_custom_call.1} parent=1 // pred_check_branch
      %2127 = sbr.rel (0) target = $region57
    $region56: #{tpu_custom_call.1} parent=1 // pred_region
      %s2129 = ssub.s32 128, 128
      %2130 = vsyncadd [#allocation4], %s2129
      %s2132 = sshll.u32 [#allocation11], 4
      %s2133 = int_to_ptr.vmem [resolvable:$true] %s2132
      %2135 = dma.vmem_to_hbm [thread:$0]  %s2133, 128, %s8, [#allocation4]
    $region57: #{tpu_custom_call.1} parent=1 // pred_fallthru
      _
    // Predicated region
    $region58: #{tpu_custom_call.1} parent=1 // pred_check
      _
    $region59: #{tpu_custom_call.1} parent=1 // pred_check_branch
      %2137 = sbr.rel (0) target = $region61
    $region60: #{tpu_custom_call.1} parent=1 // pred_region
      %2138 = dma.done [#allocation4], 128
    $region61: #{tpu_custom_call.1} parent=1 // pred_fallthru
      _
    %2139 = vsyncpa [#allocation3], 1
    %2140 = vsyncpa [#allocation6], 1
    %2141 = vsyncpa [#allocation9], 1
    %2142 = vsyncpa [#allocation4], 1

</llo_original>
